<compile_context>
chip_gen: v7x
topology: tpu7x:2x2x1
jax: 0.10.0
libtpu: 0.0.40
codegen_flags: <defaults>
</compile_context>

<pallas_src>
import math
import functools

import jax
import jax.numpy as jnp
from jax.experimental import pallas as pl
from jax.experimental.pallas import tpu as pltpu


def _round_up(v, m):
    return ((v + m - 1) // m) * m


def _takes_skip(i, skip_index):
    # Layer i receives concat([h, inputs]) iff the previous layer triggered the
    # skip concat in the PyTorch forward: (i - 1) % skip_index == 0 and i > 1.
    return i > 1 and (i - 1) % skip_index == 0


def _tpu_defaults():
    """(vmem_limit_bytes, default_tile_rows), generation-aware."""
    vmem_cap = 64 * 1024 * 1024
    try:
        vmem_cap = int(pltpu.get_tpu_info().vmem_capacity_bytes)
    except Exception:
        pass
    if vmem_cap >= 128 * 1024 * 1024:          # v5e / v6e: 128 MiB physical
        return 100 * 1024 * 1024, 1024
    return 48 * 1024 * 1024, 512               # v7x: 64 MiB physical


def _apply_activation(y, activation):
    if activation == "relu":
        return jnp.maximum(y, 0.0)
    if activation == "sigmoid":
        # exp (EUP) + approx reciprocal (EUP slot, near-free) instead of a divide.
        return pl.reciprocal(1.0 + jnp.exp(-y), approx=True)
    if activation == "softplus":
        # Minimal stable form: one exp + one log1p per element.
        return jnp.maximum(y, 0.0) + jnp.log1p(jnp.exp(-jnp.abs(y)))
    raise ValueError(f"unknown activation {activation}")


# ---------------------------------------------------------------------------
# Fused kernel: one row tile goes through every layer while weights sit in VMEM
# ---------------------------------------------------------------------------
def _fused_mlp_kernel(x_ref, *refs, net_depth, skip_index, hwp, output_dim,
                      activation, last_activation):
    o_ref = refs[-1]
    wb = refs[:-1]                                # (w0, b0, w1, b1, ...)

    x_bf = x_ref[...].astype(jnp.bfloat16)        # (tm, F), kept for skip layers
    h = x_bf
    for i in range(net_depth):
        w_ref = wb[2 * i]                         # bf16 weights
        b = wb[2 * i + 1][...]                    # (1, d_out_p) f32 bias
        if _takes_skip(i, skip_index):
            # concat([h, x]) @ W  ==  h @ W_top + x @ W_bottom (no concat built)
            y = jnp.dot(h, w_ref[:hwp, :], preferred_element_type=jnp.float32)
            y = y + jnp.dot(x_bf, w_ref[hwp:, :],
                            preferred_element_type=jnp.float32)
        else:
            y = jnp.dot(h, w_ref[...], preferred_element_type=jnp.float32)
        y = y + b                                 # f32 bias-add
        is_last = i == net_depth - 1
        if not (is_last and not last_activation):
            y = _apply_activation(y, activation)  # f32 activation math
        h = y if is_last else y.astype(jnp.bfloat16)
    # Narrow, unpadded store: only the useful output lanes hit HBM.
    o_ref[...] = h[:, :output_dim].astype(o_ref.dtype)


# ---------------------------------------------------------------------------
# Parameters: PyTorch-layout construction + one-time kernel-layout preparation
# ---------------------------------------------------------------------------
def make_mlp_params(key, net_depth, net_width, skip_index, input_dim, output_dim):
    """PyTorch-layout parameters: list of (w: (d_out, d_in), b: (d_out,))."""
    params = []
    for i in range(net_depth):
        if i == 0:
            dim_in = input_dim
        elif (i - 1) % skip_index == 0 and i > 1:
            dim_in = net_width + input_dim
        else:
            dim_in = net_width
        dim_out = output_dim if i == net_depth - 1 else net_width
        key, kw, kb = jax.random.split(key, 3)
        bound = 1.0 / math.sqrt(dim_in)
        w = jax.random.uniform(kw, (dim_out, dim_in), jnp.float32, -bound, bound)
        b = jax.random.uniform(kb, (dim_out,), jnp.float32, -bound, bound)
        params.append((w, b))
    return params


def prepare_mlp_params(params, *, net_width, skip_index, input_dim):
    """One-time conversion to kernel layout: transposed, zero-padded, bf16.

    Hidden/output widths are padded to multiples of 128 lanes.  Skip-layer
    weights are stored as [hidden-part (padded to hwp rows) ; input-part]
    stacked along K so the kernel can do the concat as two dots.  Zero padding
    is exact: padded K rows are zero, so whatever the padded activation lanes
    contain contributes nothing downstream.  Weights are bf16 (MXU fast path),
    biases stay f32.
    """
    hwp = _round_up(net_width, 128)
    prepared = []
    for i, (w, b) in enumerate(params):
        dim_out, dim_in = w.shape
        d_out_p = _round_up(dim_out, 128)
        wt = jnp.asarray(w, jnp.float32).T                 # (dim_in, dim_out)
        if i == 0:
            wp = jnp.zeros((dim_in, d_out_p), jnp.float32)
            wp = wp.at[:, :dim_out].set(wt)
        elif _takes_skip(i, skip_index):
            wp = jnp.zeros((hwp + input_dim, d_out_p), jnp.float32)
            wp = wp.at[:net_width, :dim_out].set(wt[:net_width])
            wp = wp.at[hwp:hwp + input_dim, :dim_out].set(wt[net_width:])
        else:
            wp = jnp.zeros((hwp, d_out_p), jnp.float32)
            wp = wp.at[:net_width, :dim_out].set(wt)
        bp = jnp.zeros((1, d_out_p), jnp.float32)
        bp = bp.at[0, :dim_out].set(jnp.asarray(b, jnp.float32))
        prepared.append((wp.astype(jnp.bfloat16), bp))     # bf16 W, f32 b
    return prepared, hwp


# ---------------------------------------------------------------------------
# Forward (matches the PyTorch module's forward)
# ---------------------------------------------------------------------------
def mlp_forward(x, prepared, *, skip_index, input_dim, output_dim,
                activation, last_activation=True, tile_rows=None):
    wb, hwp = prepared
    net_depth = len(wb)
    B, S, F = x.shape
    assert F == input_dim
    N = B * S
    x2d = x.reshape(N, F)
    if x2d.dtype != jnp.float32:
        x2d = x2d.astype(jnp.float32)

    vmem_limit, default_tile = _tpu_defaults()
    if tile_rows is None:
        tile_rows = default_tile

    # Balanced row tiles, at least 2 (and even when >1) so both v7x TCs get work.
    num_tiles = max(1, pl.cdiv(N, tile_rows))
    if N > 8:
        num_tiles = max(num_tiles, 2)
    if num_tiles > 1 and num_tiles % 2 == 1:
        num_tiles += 1
    tm = max(8, _round_up(pl.cdiv(N, num_tiles), 8))
    grid = pl.cdiv(N, tm)          # partial tail tile; OOB rows never stored

    flat = []
    for wp, bp in wb:
        flat += [wp, bp]

    # Scheduling hint for XLA around the custom call.
    flops = sum(2 * N * wp.shape[0] * wp.shape[1] for wp, _ in wb)
    transcendentals = 0
    if activation in ("sigmoid", "softplus"):
        per = 1 if activation == "sigmoid" else 2
        transcendentals = per * N * sum(wp.shape[1] for wp, _ in wb)
    bytes_accessed = (x2d.size * 4
                      + sum(wp.size * 2 + bp.size * 4 for wp, bp in wb)
                      + N * output_dim * 4)
    cost = pl.CostEstimate(flops=flops, transcendentals=transcendentals,
                           bytes_accessed=bytes_accessed)

    kernel = functools.partial(
        _fused_mlp_kernel, net_depth=net_depth, skip_index=skip_index,
        hwp=hwp, output_dim=output_dim, activation=activation,
        last_activation=last_activation)

    def call(single_buffer_weights):
        resident = ({"pipeline_mode": pl.Buffered(1)}
                    if single_buffer_weights else {})
        in_specs = [pl.BlockSpec((tm, F), lambda i: (i, 0))]
        for wp, bp in wb:
            # Constant index_map -> weights/biases stay resident in VMEM;
            # Buffered(1) drops the useless second buffer.
            in_specs.append(pl.BlockSpec(wp.shape, lambda i: (0, 0), **resident))
            in_specs.append(pl.BlockSpec(bp.shape, lambda i: (0, 0), **resident))
        return pl.pallas_call(
            kernel,
            out_shape=jax.ShapeDtypeStruct((N, output_dim), jnp.float32),
            grid_spec=pltpu.PrefetchScalarGridSpec(
                num_scalar_prefetch=0,
                grid=(grid,),
                in_specs=in_specs,
                out_specs=pl.BlockSpec((tm, output_dim), lambda i: (i, 0)),
            ),
            compiler_params=pltpu.CompilerParams(
                dimension_semantics=("parallel",),    # row tiles shard across TCs
                vmem_limit_bytes=vmem_limit),
            cost_estimate=cost,
        )(x2d, *flat)

    try:
        out2d = call(True)      # single-buffered resident weights (v7x VMEM win)
    except Exception:
        out2d = call(False)     # fallback: default double buffering

    # The PyTorch forward also concats the inputs AFTER the last layer when
    # (net_depth - 1) % skip_index == 0; do that tiny concat as plain-JAX glue.
    if (net_depth - 1) % skip_index == 0 and (net_depth - 1) > 0:
        out2d = jnp.concatenate([out2d, x2d], axis=-1)
    return out2d.reshape(B, S, -1)


# ---------------------------------------------------------------------------
# Pure-JAX references for verification
# ---------------------------------------------------------------------------
def mlp_forward_ref(x, params, *, skip_index, activation, last_activation=True,
                    emulate_kernel_bf16=False):
    def act(v):
        if activation == "relu":
            return jnp.maximum(v, 0.0)
        if activation == "sigmoid":
            return jax.nn.sigmoid(v)
        return jnp.maximum(v, 0.0) + jnp.log1p(jnp.exp(-jnp.abs(v)))

    B, S, F = x.shape
    inputs = x.reshape(B * S, F).astype(jnp.float32)
    n = len(params)
    cdt = jnp.bfloat16 if emulate_kernel_bf16 else jnp.float32
    inputs_c = inputs.astype(cdt)
    h = inputs_c
    for i, (w, b) in enumerate(params):
        wc = jnp.asarray(w, jnp.float32).astype(cdt)
        y = jnp.dot(h, wc.T, preferred_element_type=jnp.float32)
        y = y + jnp.asarray(b, jnp.float32)
        if not (i == n - 1 and not last_activation):
            y = act(y)
        h = y if i == n - 1 else y.astype(cdt)
        if i % skip_index == 0 and i > 0:
            h = jnp.concatenate([h, inputs if i == n - 1 else inputs_c], axis=-1)
    return h.reshape(B, S, -1)


if __name__ == "__main__":
    def run_case(*, net_depth, net_width, skip_index, input_dim, output_dim,
                 activation, last_activation, batch, num_samples):
        key = jax.random.PRNGKey(0)
        key, kx = jax.random.split(key)
        x = jax.random.normal(kx, (batch, num_samples, input_dim), jnp.float32)
        params = make_mlp_params(key, net_depth, net_width, skip_index,
                                 input_dim, output_dim)
        prepared = prepare_mlp_params(params, net_width=net_width,
                                      skip_index=skip_index, input_dim=input_dim)
        out = mlp_forward(x, prepared, skip_index=skip_index,
                          input_dim=input_dim, output_dim=output_dim,
                          activation=activation, last_activation=last_activation)
        out = jax.block_until_ready(out)

        # Tight check vs. a reference that mirrors the kernel's bf16 numerics,
        # loose check vs. the true f32 reference (bf16 quantization noise).
        ref_bf = mlp_forward_ref(x, params, skip_index=skip_index,
                                 activation=activation,
                                 last_activation=last_activation,
                                 emulate_kernel_bf16=True)
        ref_f32 = mlp_forward_ref(x, params, skip_index=skip_index,
                                  activation=activation,
                                  last_activation=last_activation,
                                  emulate_kernel_bf16=False)
        assert out.shape == ref_f32.shape, (out.shape, ref_f32.shape)
        err_bf = float(jnp.max(jnp.abs(out - ref_bf)))
        err_f32 = float(jnp.max(jnp.abs(out - ref_f32)))
        assert jnp.allclose(out, ref_bf, atol=2e-3, rtol=2e-3), \
            f"bf16-mirror max abs err {err_bf}"
        assert jnp.allclose(out, ref_f32, atol=8e-2, rtol=8e-2), \
            f"f32-ref max abs err {err_f32}"

    # Main config: skip concat after layer 2, so layer 3 exercises the
    # two-dot skip path inside the fused kernel.
    run_case(net_depth=4, net_width=32, skip_index=2, input_dim=4, output_dim=4,
             activation="relu", last_activation=True, batch=2, num_samples=64)
    # Exercises the post-last-layer concat path and last_activation=False.
    run_case(net_depth=3, net_width=32, skip_index=2, input_dim=4, output_dim=4,
             activation="softplus", last_activation=False, batch=2, num_samples=8)

    print("KERNEL_OK")
</pallas_src>

<mosaic_0001>
module attributes {stable_mosaic.version = 11 : i64} {
  func.func @_fused_mlp_kernel(%arg0: i32, %arg1: memref<64x4xf32, #tpu.memory_space<vmem>>, %arg2: memref<4x128xbf16, #tpu.memory_space<vmem>>, %arg3: memref<1x128xf32, #tpu.memory_space<vmem>>, %arg4: memref<128x128xbf16, #tpu.memory_space<vmem>>, %arg5: memref<1x128xf32, #tpu.memory_space<vmem>>, %arg6: memref<128x128xbf16, #tpu.memory_space<vmem>>, %arg7: memref<1x128xf32, #tpu.memory_space<vmem>>, %arg8: memref<132x128xbf16, #tpu.memory_space<vmem>>, %arg9: memref<1x128xf32, #tpu.memory_space<vmem>>, %arg10: memref<64x4xf32, #tpu.memory_space<vmem>>) attributes {dimension_semantics = [#tpu.dimension_semantics<parallel>], iteration_bounds = array<i64: 2>, scalar_prefetch = 0 : i64, scratch_operands = 0 : i64, tpu.core_type = #tpu.core_type<tc>, window_params = [{transform_indices = @transform_0, window_bounds = array<i64: 64, 4>}, {pipeline_mode = #tpu.pipeline_mode<synchronous>, transform_indices = @transform_1, window_bounds = array<i64: 4, 128>}, {pipeline_mode = #tpu.pipeline_mode<synchronous>, transform_indices = @transform_2, window_bounds = array<i64: 1, 128>}, {pipeline_mode = #tpu.pipeline_mode<synchronous>, transform_indices = @transform_3, window_bounds = array<i64: 128, 128>}, {pipeline_mode = #tpu.pipeline_mode<synchronous>, transform_indices = @transform_4, window_bounds = array<i64: 1, 128>}, {pipeline_mode = #tpu.pipeline_mode<synchronous>, transform_indices = @transform_5, window_bounds = array<i64: 128, 128>}, {pipeline_mode = #tpu.pipeline_mode<synchronous>, transform_indices = @transform_6, window_bounds = array<i64: 1, 128>}, {pipeline_mode = #tpu.pipeline_mode<synchronous>, transform_indices = @transform_7, window_bounds = array<i64: 132, 128>}, {pipeline_mode = #tpu.pipeline_mode<synchronous>, transform_indices = @transform_8, window_bounds = array<i64: 1, 128>}, {transform_indices = @transform_9, window_bounds = array<i64: 64, 4>}]} {
    %c0 = arith.constant 0 : index
    %c0_0 = arith.constant 0 : index
    %0 = vector.load %arg1[%c0, %c0_0] : memref<64x4xf32, #tpu.memory_space<vmem>>, vector<64x4xf32>
    %1 = arith.truncf %0 : vector<64x4xf32> to vector<64x4xbf16>
    %c0_1 = arith.constant 0 : index
    %c0_2 = arith.constant 0 : index
    %2 = vector.load %arg3[%c0_1, %c0_2] : memref<1x128xf32, #tpu.memory_space<vmem>>, vector<1x128xf32>
    %c0_3 = arith.constant 0 : index
    %c0_4 = arith.constant 0 : index
    %3 = vector.load %arg2[%c0_3, %c0_4] : memref<4x128xbf16, #tpu.memory_space<vmem>>, vector<4x128xbf16>
    %cst = arith.constant dense<0.000000e+00> : vector<64x128xf32>
    %4 = tpu.matmul %1, %3, %cst {dimension_numbers = #tpu.dot_dimension_numbers<[1], [0], [0], [1], [0, 0, 1, 1], [], []>} : vector<64x4xbf16>, vector<4x128xbf16>, vector<64x128xf32> -> vector<64x128xf32>
    %5 = vector.broadcast %2 : vector<1x128xf32> to vector<64x128xf32>
    %6 = arith.addf %4, %5 : vector<64x128xf32>
    %cst_5 = arith.constant 0.000000e+00 : f32
    %7 = vector.broadcast %cst_5 : f32 to vector<64x128xf32>
    %8 = arith.maximumf %6, %7 : vector<64x128xf32>
    %9 = arith.truncf %8 : vector<64x128xf32> to vector<64x128xbf16>
    %c0_6 = arith.constant 0 : index
    %c0_7 = arith.constant 0 : index
    %10 = vector.load %arg5[%c0_6, %c0_7] : memref<1x128xf32, #tpu.memory_space<vmem>>, vector<1x128xf32>
    %c0_8 = arith.constant 0 : index
    %c0_9 = arith.constant 0 : index
    %11 = vector.load %arg4[%c0_8, %c0_9] : memref<128x128xbf16, #tpu.memory_space<vmem>>, vector<128x128xbf16>
    %cst_10 = arith.constant dense<0.000000e+00> : vector<64x128xf32>
    %12 = tpu.matmul %9, %11, %cst_10 {dimension_numbers = #tpu.dot_dimension_numbers<[1], [0], [0], [1], [0, 0, 1, 1], [], []>} : vector<64x128xbf16>, vector<128x128xbf16>, vector<64x128xf32> -> vector<64x128xf32>
    %13 = vector.broadcast %10 : vector<1x128xf32> to vector<64x128xf32>
    %14 = arith.addf %12, %13 : vector<64x128xf32>
    %cst_11 = arith.constant 0.000000e+00 : f32
    %15 = vector.broadcast %cst_11 : f32 to vector<64x128xf32>
    %16 = arith.maximumf %14, %15 : vector<64x128xf32>
    %17 = arith.truncf %16 : vector<64x128xf32> to vector<64x128xbf16>
    %c0_12 = arith.constant 0 : index
    %c0_13 = arith.constant 0 : index
    %18 = vector.load %arg7[%c0_12, %c0_13] : memref<1x128xf32, #tpu.memory_space<vmem>>, vector<1x128xf32>
    %c0_14 = arith.constant 0 : index
    %c0_15 = arith.constant 0 : index
    %19 = vector.load %arg6[%c0_14, %c0_15] : memref<128x128xbf16, #tpu.memory_space<vmem>>, vector<128x128xbf16>
    %cst_16 = arith.constant dense<0.000000e+00> : vector<64x128xf32>
    %20 = tpu.matmul %17, %19, %cst_16 {dimension_numbers = #tpu.dot_dimension_numbers<[1], [0], [0], [1], [0, 0, 1, 1], [], []>} : vector<64x128xbf16>, vector<128x128xbf16>, vector<64x128xf32> -> vector<64x128xf32>
    %21 = vector.broadcast %18 : vector<1x128xf32> to vector<64x128xf32>
    %22 = arith.addf %20, %21 : vector<64x128xf32>
    %cst_17 = arith.constant 0.000000e+00 : f32
    %23 = vector.broadcast %cst_17 : f32 to vector<64x128xf32>
    %24 = arith.maximumf %22, %23 : vector<64x128xf32>
    %25 = arith.truncf %24 : vector<64x128xf32> to vector<64x128xbf16>
    %c0_18 = arith.constant 0 : index
    %c0_19 = arith.constant 0 : index
    %26 = vector.load %arg9[%c0_18, %c0_19] : memref<1x128xf32, #tpu.memory_space<vmem>>, vector<1x128xf32>
    %c0_20 = arith.constant 0 : index
    %c0_21 = arith.constant 0 : index
    %27 = vector.load %arg8[%c0_20, %c0_21] : memref<132x128xbf16, #tpu.memory_space<vmem>>, vector<128x128xbf16>
    %cst_22 = arith.constant dense<0.000000e+00> : vector<64x128xf32>
    %28 = tpu.matmul %25, %27, %cst_22 {dimension_numbers = #tpu.dot_dimension_numbers<[1], [0], [0], [1], [0, 0, 1, 1], [], []>} : vector<64x128xbf16>, vector<128x128xbf16>, vector<64x128xf32> -> vector<64x128xf32>
    %c128 = arith.constant 128 : index
    %c0_23 = arith.constant 0 : index
    %29 = vector.load %arg8[%c128, %c0_23] : memref<132x128xbf16, #tpu.memory_space<vmem>>, vector<4x128xbf16>
    %cst_24 = arith.constant dense<0.000000e+00> : vector<64x128xf32>
    %30 = tpu.matmul %1, %29, %cst_24 {dimension_numbers = #tpu.dot_dimension_numbers<[1], [0], [0], [1], [0, 0, 1, 1], [], []>} : vector<64x4xbf16>, vector<4x128xbf16>, vector<64x128xf32> -> vector<64x128xf32>
    %31 = arith.addf %28, %30 : vector<64x128xf32>
    %32 = vector.broadcast %26 : vector<1x128xf32> to vector<64x128xf32>
    %33 = arith.addf %31, %32 : vector<64x128xf32>
    %cst_25 = arith.constant 0.000000e+00 : f32
    %34 = vector.broadcast %cst_25 : f32 to vector<64x128xf32>
    %35 = arith.maximumf %33, %34 : vector<64x128xf32>
    %36 = vector.extract_strided_slice %35 {offsets = [0, 0], sizes = [64, 4], strides = [1, 1]} : vector<64x128xf32> to vector<64x4xf32>
    %c0_26 = arith.constant 0 : index
    %c0_27 = arith.constant 0 : index
    %37 = vector.load %arg10[%c0_26, %c0_27] : memref<64x4xf32, #tpu.memory_space<vmem>>, vector<64x4xf32>
    tpu.vector_store %arg10[%c0_26, %c0_27], %36 {strides = array<i32>} : memref<64x4xf32, #tpu.memory_space<vmem>>, vector<64x4xf32>,
    return
  }
  func.func @transform_0(%arg0: i32) -> (i32, i32) {
    %c0_i32 = arith.constant 0 : i32
    %c0_i32_0 = arith.constant 0 : i32
    return %arg0, %c0_i32 : i32, i32
  }
  func.func @transform_1(%arg0: i32) -> (i32, i32) {
    %c0_i32 = arith.constant 0 : i32
    %c0_i32_0 = arith.constant 0 : i32
    %c0_i32_1 = arith.constant 0 : i32
    return %c0_i32, %c0_i32_0 : i32, i32
  }
  func.func @transform_2(%arg0: i32) -> (i32, i32) {
    %c0_i32 = arith.constant 0 : i32
    %c0_i32_0 = arith.constant 0 : i32
    %c0_i32_1 = arith.constant 0 : i32
    return %c0_i32, %c0_i32_0 : i32, i32
  }
  func.func @transform_3(%arg0: i32) -> (i32, i32) {
    %c0_i32 = arith.constant 0 : i32
    %c0_i32_0 = arith.constant 0 : i32
    %c0_i32_1 = arith.constant 0 : i32
    return %c0_i32, %c0_i32_0 : i32, i32
  }
  func.func @transform_4(%arg0: i32) -> (i32, i32) {
    %c0_i32 = arith.constant 0 : i32
    %c0_i32_0 = arith.constant 0 : i32
    %c0_i32_1 = arith.constant 0 : i32
    return %c0_i32, %c0_i32_0 : i32, i32
  }
  func.func @transform_5(%arg0: i32) -> (i32, i32) {
    %c0_i32 = arith.constant 0 : i32
    %c0_i32_0 = arith.constant 0 : i32
    %c0_i32_1 = arith.constant 0 : i32
    return %c0_i32, %c0_i32_0 : i32, i32
  }
  func.func @transform_6(%arg0: i32) -> (i32, i32) {
    %c0_i32 = arith.constant 0 : i32
    %c0_i32_0 = arith.constant 0 : i32
    %c0_i32_1 = arith.constant 0 : i32
    return %c0_i32, %c0_i32_0 : i32, i32
  }
  func.func @transform_7(%arg0: i32) -> (i32, i32) {
    %c0_i32 = arith.constant 0 : i32
    %c0_i32_0 = arith.constant 0 : i32
    %c0_i32_1 = arith.constant 0 : i32
    return %c0_i32, %c0_i32_0 : i32, i32
  }
  func.func @transform_8(%arg0: i32) -> (i32, i32) {
    %c0_i32 = arith.constant 0 : i32
    %c0_i32_0 = arith.constant 0 : i32
    %c0_i32_1 = arith.constant 0 : i32
    return %c0_i32, %c0_i32_0 : i32, i32
  }
  func.func @transform_9(%arg0: i32) -> (i32, i32) {
    %c0_i32 = arith.constant 0 : i32
    %c0_i32_0 = arith.constant 0 : i32
    return %arg0, %c0_i32 : i32, i32
  }
}

module attributes {stable_mosaic.version = 11 : i64} {
  func.func @_fused_mlp_kernel(%arg0: i32, %arg1: memref<64x4xf32, #tpu.memory_space<vmem>>, %arg2: memref<4x128xbf16, #tpu.memory_space<vmem>>, %arg3: memref<1x128xf32, #tpu.memory_space<vmem>>, %arg4: memref<128x128xbf16, #tpu.memory_space<vmem>>, %arg5: memref<1x128xf32, #tpu.memory_space<vmem>>, %arg6: memref<128x128xbf16, #tpu.memory_space<vmem>>, %arg7: memref<1x128xf32, #tpu.memory_space<vmem>>, %arg8: memref<132x128xbf16, #tpu.memory_space<vmem>>, %arg9: memref<1x128xf32, #tpu.memory_space<vmem>>, %arg10: memref<64x4xf32, #tpu.memory_space<vmem>>) attributes {dimension_semantics = [#tpu.dimension_semantics<parallel>], iteration_bounds = array<i64: 2>, scalar_prefetch = 0 : i64, scratch_operands = 0 : i64, tpu.core_type = #tpu.core_type<tc>, window_params = [{transform_indices = @transform_0, window_bounds = array<i64: 64, 4>}, {pipeline_mode = #tpu.pipeline_mode<synchronous>, transform_indices = @transform_1, window_bounds = array<i64: 4, 128>}, {pipeline_mode = #tpu.pipeline_mode<synchronous>, transform_indices = @transform_2, window_bounds = array<i64: 1, 128>}, {pipeline_mode = #tpu.pipeline_mode<synchronous>, transform_indices = @transform_3, window_bounds = array<i64: 128, 128>}, {pipeline_mode = #tpu.pipeline_mode<synchronous>, transform_indices = @transform_4, window_bounds = array<i64: 1, 128>}, {pipeline_mode = #tpu.pipeline_mode<synchronous>, transform_indices = @transform_5, window_bounds = array<i64: 128, 128>}, {pipeline_mode = #tpu.pipeline_mode<synchronous>, transform_indices = @transform_6, window_bounds = array<i64: 1, 128>}, {pipeline_mode = #tpu.pipeline_mode<synchronous>, transform_indices = @transform_7, window_bounds = array<i64: 132, 128>}, {pipeline_mode = #tpu.pipeline_mode<synchronous>, transform_indices = @transform_8, window_bounds = array<i64: 1, 128>}, {transform_indices = @transform_9, window_bounds = array<i64: 64, 4>}]} {
    %c0 = arith.constant 0 : index
    %c0_0 = arith.constant 0 : index
    %0 = vector.load %arg1[%c0, %c0_0] : memref<64x4xf32, #tpu.memory_space<vmem>>, vector<64x4xf32>
    %1 = arith.truncf %0 : vector<64x4xf32> to vector<64x4xbf16>
    %c0_1 = arith.constant 0 : index
    %c0_2 = arith.constant 0 : index
    %2 = vector.load %arg3[%c0_1, %c0_2] : memref<1x128xf32, #tpu.memory_space<vmem>>, vector<1x128xf32>
    %c0_3 = arith.constant 0 : index
    %c0_4 = arith.constant 0 : index
    %3 = vector.load %arg2[%c0_3, %c0_4] : memref<4x128xbf16, #tpu.memory_space<vmem>>, vector<4x128xbf16>
    %cst = arith.constant dense<0.000000e+00> : vector<64x128xf32>
    %4 = tpu.matmul %1, %3, %cst {dimension_numbers = #tpu.dot_dimension_numbers<[1], [0], [0], [1], [0, 0, 1, 1], [], []>} : vector<64x4xbf16>, vector<4x128xbf16>, vector<64x128xf32> -> vector<64x128xf32>
    %5 = vector.broadcast %2 : vector<1x128xf32> to vector<64x128xf32>
    %6 = arith.addf %4, %5 : vector<64x128xf32>
    %cst_5 = arith.constant 0.000000e+00 : f32
    %7 = vector.broadcast %cst_5 : f32 to vector<64x128xf32>
    %8 = arith.maximumf %6, %7 : vector<64x128xf32>
    %9 = arith.truncf %8 : vector<64x128xf32> to vector<64x128xbf16>
    %c0_6 = arith.constant 0 : index
    %c0_7 = arith.constant 0 : index
    %10 = vector.load %arg5[%c0_6, %c0_7] : memref<1x128xf32, #tpu.memory_space<vmem>>, vector<1x128xf32>
    %c0_8 = arith.constant 0 : index
    %c0_9 = arith.constant 0 : index
    %11 = vector.load %arg4[%c0_8, %c0_9] : memref<128x128xbf16, #tpu.memory_space<vmem>>, vector<128x128xbf16>
    %cst_10 = arith.constant dense<0.000000e+00> : vector<64x128xf32>
    %12 = tpu.matmul %9, %11, %cst_10 {dimension_numbers = #tpu.dot_dimension_numbers<[1], [0], [0], [1], [0, 0, 1, 1], [], []>} : vector<64x128xbf16>, vector<128x128xbf16>, vector<64x128xf32> -> vector<64x128xf32>
    %13 = vector.broadcast %10 : vector<1x128xf32> to vector<64x128xf32>
    %14 = arith.addf %12, %13 : vector<64x128xf32>
    %cst_11 = arith.constant 0.000000e+00 : f32
    %15 = vector.broadcast %cst_11 : f32 to vector<64x128xf32>
    %16 = arith.maximumf %14, %15 : vector<64x128xf32>
    %17 = arith.truncf %16 : vector<64x128xf32> to vector<64x128xbf16>
    %c0_12 = arith.constant 0 : index
    %c0_13 = arith.constant 0 : index
    %18 = vector.load %arg7[%c0_12, %c0_13] : memref<1x128xf32, #tpu.memory_space<vmem>>, vector<1x128xf32>
    %c0_14 = arith.constant 0 : index
    %c0_15 = arith.constant 0 : index
    %19 = vector.load %arg6[%c0_14, %c0_15] : memref<128x128xbf16, #tpu.memory_space<vmem>>, vector<128x128xbf16>
    %cst_16 = arith.constant dense<0.000000e+00> : vector<64x128xf32>
    %20 = tpu.matmul %17, %19, %cst_16 {dimension_numbers = #tpu.dot_dimension_numbers<[1], [0], [0], [1], [0, 0, 1, 1], [], []>} : vector<64x128xbf16>, vector<128x128xbf16>, vector<64x128xf32> -> vector<64x128xf32>
    %21 = vector.broadcast %18 : vector<1x128xf32> to vector<64x128xf32>
    %22 = arith.addf %20, %21 : vector<64x128xf32>
    %cst_17 = arith.constant 0.000000e+00 : f32
    %23 = vector.broadcast %cst_17 : f32 to vector<64x128xf32>
    %24 = arith.maximumf %22, %23 : vector<64x128xf32>
    %25 = arith.truncf %24 : vector<64x128xf32> to vector<64x128xbf16>
    %c0_18 = arith.constant 0 : index
    %c0_19 = arith.constant 0 : index
    %26 = vector.load %arg9[%c0_18, %c0_19] : memref<1x128xf32, #tpu.memory_space<vmem>>, vector<1x128xf32>
    %c0_20 = arith.constant 0 : index
    %c0_21 = arith.constant 0 : index
    %27 = vector.load %arg8[%c0_20, %c0_21] : memref<132x128xbf16, #tpu.memory_space<vmem>>, vector<128x128xbf16>
    %cst_22 = arith.constant dense<0.000000e+00> : vector<64x128xf32>
    %28 = tpu.matmul %25, %27, %cst_22 {dimension_numbers = #tpu.dot_dimension_numbers<[1], [0], [0], [1], [0, 0, 1, 1], [], []>} : vector<64x128xbf16>, vector<128x128xbf16>, vector<64x128xf32> -> vector<64x128xf32>
    %c128 = arith.constant 128 : index
    %c0_23 = arith.constant 0 : index
    %29 = vector.load %arg8[%c128, %c0_23] : memref<132x128xbf16, #tpu.memory_space<vmem>>, vector<4x128xbf16>
    %cst_24 = arith.constant dense<0.000000e+00> : vector<64x128xf32>
    %30 = tpu.matmul %1, %29, %cst_24 {dimension_numbers = #tpu.dot_dimension_numbers<[1], [0], [0], [1], [0, 0, 1, 1], [], []>} : vector<64x4xbf16>, vector<4x128xbf16>, vector<64x128xf32> -> vector<64x128xf32>
    %31 = arith.addf %28, %30 : vector<64x128xf32>
    %32 = vector.broadcast %26 : vector<1x128xf32> to vector<64x128xf32>
    %33 = arith.addf %31, %32 : vector<64x128xf32>
    %cst_25 = arith.constant 0.000000e+00 : f32
    %34 = vector.broadcast %cst_25 : f32 to vector<64x128xf32>
    %35 = arith.maximumf %33, %34 : vector<64x128xf32>
    %36 = vector.extract_strided_slice %35 {offsets = [0, 0], sizes = [64, 4], strides = [1, 1]} : vector<64x128xf32> to vector<64x4xf32>
    %c0_26 = arith.constant 0 : index
    %c0_27 = arith.constant 0 : index
    %37 = vector.load %arg10[%c0_26, %c0_27] : memref<64x4xf32, #tpu.memory_space<vmem>>, vector<64x4xf32>
    tpu.vector_store %arg10[%c0_26, %c0_27], %36 {strides = array<i32>} : memref<64x4xf32, #tpu.memory_space<vmem>>, vector<64x4xf32>,
    return
  }
  func.func @transform_0(%arg0: i32) -> (i32, i32) {
    %c0_i32 = arith.constant 0 : i32
    %c0_i32_0 = arith.constant 0 : i32
    return %arg0, %c0_i32 : i32, i32
  }
  func.func @transform_1(%arg0: i32) -> (i32, i32) {
    %c0_i32 = arith.constant 0 : i32
    %c0_i32_0 = arith.constant 0 : i32
    %c0_i32_1 = arith.constant 0 : i32
    return %c0_i32, %c0_i32_0 : i32, i32
  }
  func.func @transform_2(%arg0: i32) -> (i32, i32) {
    %c0_i32 = arith.constant 0 : i32
    %c0_i32_0 = arith.constant 0 : i32
    %c0_i32_1 = arith.constant 0 : i32
    return %c0_i32, %c0_i32_0 : i32, i32
  }
  func.func @transform_3(%arg0: i32) -> (i32, i32) {
    %c0_i32 = arith.constant 0 : i32
    %c0_i32_0 = arith.constant 0 : i32
    %c0_i32_1 = arith.constant 0 : i32
    return %c0_i32, %c0_i32_0 : i32, i32
  }
  func.func @transform_4(%arg0: i32) -> (i32, i32) {
    %c0_i32 = arith.constant 0 : i32
    %c0_i32_0 = arith.constant 0 : i32
    %c0_i32_1 = arith.constant 0 : i32
    return %c0_i32, %c0_i32_0 : i32, i32
  }
  func.func @transform_5(%arg0: i32) -> (i32, i32) {
    %c0_i32 = arith.constant 0 : i32
    %c0_i32_0 = arith.constant 0 : i32
    %c0_i32_1 = arith.constant 0 : i32
    return %c0_i32, %c0_i32_0 : i32, i32
  }
  func.func @transform_6(%arg0: i32) -> (i32, i32) {
    %c0_i32 = arith.constant 0 : i32
    %c0_i32_0 = arith.constant 0 : i32
    %c0_i32_1 = arith.constant 0 : i32
    return %c0_i32, %c0_i32_0 : i32, i32
  }
  func.func @transform_7(%arg0: i32) -> (i32, i32) {
    %c0_i32 = arith.constant 0 : i32
    %c0_i32_0 = arith.constant 0 : i32
    %c0_i32_1 = arith.constant 0 : i32
    return %c0_i32, %c0_i32_0 : i32, i32
  }
  func.func @transform_8(%arg0: i32) -> (i32, i32) {
    %c0_i32 = arith.constant 0 : i32
    %c0_i32_0 = arith.constant 0 : i32
    %c0_i32_1 = arith.constant 0 : i32
    return %c0_i32, %c0_i32_0 : i32, i32
  }
  func.func @transform_9(%arg0: i32) -> (i32, i32) {
    %c0_i32 = arith.constant 0 : i32
    %c0_i32_0 = arith.constant 0 : i32
    return %arg0, %c0_i32 : i32, i32
  }
}

</mosaic_0001>

<llo_original>
// kernel: tpu_custom_call.1
$region0: #{tpu_custom_call.1}
  #allocation0 [shape = 'u32[]', space=smem, size = 0x4, offset = 0x4, fixed_abs, tag = 'smem constant byte address 0x4 - core index']
  #allocation1 [shape = 'u32[144,128]{1,0:T(1,128)}', space=vmem, size = 0x12000, scoped, tag = 'internal scratch']
  %s0 = inlined_call_operand.vmem [shape: f32[128,4], index: 0, kind: input, shape index: {}]
  %s1 = inlined_call_operand.vmem [shape: bf16[4,128], index: 1, kind: input, shape index: {}]
  %s2 = inlined_call_operand.vmem [shape: f32[1,128], index: 2, kind: input, shape index: {}]
  %s3 = inlined_call_operand.vmem [shape: bf16[128,128], index: 3, kind: input, shape index: {}]
  %s4 = inlined_call_operand.vmem [shape: f32[1,128], index: 4, kind: input, shape index: {}]
  %s5 = inlined_call_operand.hbm [shape: bf16[128,128], index: 5, kind: input, shape index: {}]
  %s6 = inlined_call_operand.vmem [shape: f32[1,128], index: 6, kind: input, shape index: {}]
  %s7 = inlined_call_operand.vmem [shape: bf16[132,128], index: 7, kind: input, shape index: {}]
  %s8 = inlined_call_operand.vmem [shape: f32[1,128], index: 8, kind: input, shape index: {}]
  %s9 = inlined_call_operand.vmem [shape: f32[128,4], index: 9, kind: output, shape index: {}]
  %s10 = sld [smem:[#allocation0]]
  $region73: #{tpu_custom_call.1} parent=0
    _
  %s12 = ssub.s32 1, %s10
  %s13 = scalar_select 0, %s12, %s10
  $region1: #{tpu_custom_call.1} parent=0
    #allocation2 [shape = 'u8[32768]{0}', space=vmem, size = 0x8000, scoped, tag = 'input window, operand 5, single buffered']
    #allocation3 [shape = 's32[2]{0}', space=sflag, size = 0x8, scoped, tag = 'scoped memory for tpu_custom_call.1']
    %14 = vsyncpa [#allocation3], 0
    loop: start=0, step=1, limit=4
    $region2: #{tpu_custom_call.1} parent=1 // loop_pre_header
      _
    $region3: #{tpu_custom_call.1} parent=1 // loop_header
      %s16 = sphi 0, %s20
      %p17 = scmp.ge.s32.totalorder %s16, 4
      %s26 = sphi 0, %s28
      %s29 = sphi 0, %s26
      %s30 = sphi 0, %s29
      %s46 = sphi 0, %s30
      %s50 = sphi 0, %s50
      %s52 = sphi 0, %s50
      %s53 = sphi 0, %s52
      %s67 = sphi 0, %s53
      %s71 = sphi 0, %s71
      %s73 = sphi 0, %s71
      %s74 = sphi 0, %s73
      %s88 = sphi 0, %s74
      %s92 = sphi 0, %s92
      %s94 = sphi 0, %s92
      %s95 = sphi 0, %s94
      %s109 = sphi 0, %s95
      %s113 = sphi 0, %s113
      %s115 = sphi 0, %s113
      %s116 = sphi 0, %s115
      %s130 = sphi 0, %s116
      %s134 = sphi 0, %s134
      %s136 = sphi 0, %s134
      %s137 = sphi 0, %s136
      %s151 = sphi 0, %s137
      %s155 = sphi 0, %s155
      %s157 = sphi 0, %s155
      %s158 = sphi 0, %s157
      %s172 = sphi 0, %s158
      %s176 = sphi 0, %s176
      %s178 = sphi 0, %s176
      %s179 = sphi 0, %s178
      %s193 = sphi 0, %s179
      %s197 = sphi 0, %s197
      %s199 = sphi 0, %s197
      %s200 = sphi 0, %s199
      %s214 = sphi 0, %s200
      %s220 = sphi 0, %s222
      %s223 = sphi 0, %s220
      %s224 = sphi 0, %s223
      %s240 = sphi 0, %s224
    $region4: #{tpu_custom_call.1} parent=1 // loop_header_branch
      %19 = sbr.rel (%p17) target = $region8
    $region5: #{tpu_custom_call.1} parent=1 // loop_body
      %s21 = ssub.s32 %s16, 1
      %s22 = ssub.s32 %s16, 2
      %s23 = sadd.s32 %s16, 1
      %s24 = ssub.s32 %s16, %s23
      %p25 = scmp.eq.s32.totalorder %s24, 0
      %s27 = sadd.s32 %s26, 1
      %s28 = scalar_select %p25, %s26, %s27
      %p31 = pneg %p25
      %p32 = scmp.eq.s32.totalorder %s16, 1
      %p33 = por %p31, %p32
      %p34 = scmp.ne.s32.totalorder %s26, %s29
      %p35 = scmp.eq.s32.totalorder %s16, 0
      %p36 = por %p34, %p35
      %p37 = scmp.ne.s32.totalorder %s26, %s29
      %p38 = scmp.eq.s32.totalorder %s21, 1
      %p39 = por %p37, %p38
      %p40 = scmp.ne.s32.totalorder %s29, %s30
      %p41 = scmp.eq.s32.totalorder %s21, 0
      %p42 = por %p40, %p41
      %p43 = scmp.ne.s32.totalorder %s29, %s30
      %p44 = scmp.eq.s32.totalorder %s22, 1
      %p45 = por %p43, %p44
      %p47 = scmp.ne.s32.totalorder %s30, %s46
      %p48 = scmp.eq.s32.totalorder %s22, 0
      %p49 = por %p47, %p48
      %s51 = sadd.s32 %s50, 1
      %p54 = scmp.eq.s32.totalorder %s16, 1
      %p55 = scmp.ne.s32.totalorder %s50, %s52
      %p56 = scmp.eq.s32.totalorder %s16, 0
      %p57 = por %p55, %p56
      %p58 = scmp.ne.s32.totalorder %s50, %s52
      %p59 = scmp.eq.s32.totalorder %s21, 1
      %p60 = por %p58, %p59
      %p61 = scmp.ne.s32.totalorder %s52, %s53
      %p62 = scmp.eq.s32.totalorder %s21, 0
      %p63 = por %p61, %p62
      %p64 = scmp.ne.s32.totalorder %s52, %s53
      %p65 = scmp.eq.s32.totalorder %s22, 1
      %p66 = por %p64, %p65
      %p68 = scmp.ne.s32.totalorder %s53, %s67
      %p69 = scmp.eq.s32.totalorder %s22, 0
      %p70 = por %p68, %p69
      %s72 = sadd.s32 %s71, 1
      %p75 = scmp.eq.s32.totalorder %s16, 1
      %p76 = scmp.ne.s32.totalorder %s71, %s73
      %p77 = scmp.eq.s32.totalorder %s16, 0
      %p78 = por %p76, %p77
      %p79 = scmp.ne.s32.totalorder %s71, %s73
      %p80 = scmp.eq.s32.totalorder %s21, 1
      %p81 = por %p79, %p80
      %p82 = scmp.ne.s32.totalorder %s73, %s74
      %p83 = scmp.eq.s32.totalorder %s21, 0
      %p84 = por %p82, %p83
      %p85 = scmp.ne.s32.totalorder %s73, %s74
      %p86 = scmp.eq.s32.totalorder %s22, 1
      %p87 = por %p85, %p86
      %p89 = scmp.ne.s32.totalorder %s74, %s88
      %p90 = scmp.eq.s32.totalorder %s22, 0
      %p91 = por %p89, %p90
      %s93 = sadd.s32 %s92, 1
      %p96 = scmp.eq.s32.totalorder %s16, 1
      %p97 = scmp.ne.s32.totalorder %s92, %s94
      %p98 = scmp.eq.s32.totalorder %s16, 0
      %p99 = por %p97, %p98
      %p100 = scmp.ne.s32.totalorder %s92, %s94
      %p101 = scmp.eq.s32.totalorder %s21, 1
      %p102 = por %p100, %p101
      %p103 = scmp.ne.s32.totalorder %s94, %s95
      %p104 = scmp.eq.s32.totalorder %s21, 0
      %p105 = por %p103, %p104
      %p106 = scmp.ne.s32.totalorder %s94, %s95
      %p107 = scmp.eq.s32.totalorder %s22, 1
      %p108 = por %p106, %p107
      %p110 = scmp.ne.s32.totalorder %s95, %s109
      %p111 = scmp.eq.s32.totalorder %s22, 0
      %p112 = por %p110, %p111
      %s114 = sadd.s32 %s113, 1
      %p117 = scmp.eq.s32.totalorder %s16, 1
      %p118 = scmp.ne.s32.totalorder %s113, %s115
      %p119 = scmp.eq.s32.totalorder %s16, 0
      %p120 = por %p118, %p119
      %p121 = scmp.ne.s32.totalorder %s113, %s115
      %p122 = scmp.eq.s32.totalorder %s21, 1
      %p123 = por %p121, %p122
      %p124 = scmp.ne.s32.totalorder %s115, %s116
      %p125 = scmp.eq.s32.totalorder %s21, 0
      %p126 = por %p124, %p125
      %p127 = scmp.ne.s32.totalorder %s115, %s116
      %p128 = scmp.eq.s32.totalorder %s22, 1
      %p129 = por %p127, %p128
      %p131 = scmp.ne.s32.totalorder %s116, %s130
      %p132 = scmp.eq.s32.totalorder %s22, 0
      %p133 = por %p131, %p132
      %s135 = sadd.s32 %s134, 1
      %p138 = scmp.eq.s32.totalorder %s16, 1
      %p139 = scmp.ne.s32.totalorder %s134, %s136
      %p140 = scmp.eq.s32.totalorder %s16, 0
      %p141 = por %p139, %p140
      %p142 = scmp.ne.s32.totalorder %s134, %s136
      %p143 = scmp.eq.s32.totalorder %s21, 1
      %p144 = por %p142, %p143
      %p145 = scmp.ne.s32.totalorder %s136, %s137
      %p146 = scmp.eq.s32.totalorder %s21, 0
      %p147 = por %p145, %p146
      %p148 = scmp.ne.s32.totalorder %s136, %s137
      %p149 = scmp.eq.s32.totalorder %s22, 1
      %p150 = por %p148, %p149
      %p152 = scmp.ne.s32.totalorder %s137, %s151
      %p153 = scmp.eq.s32.totalorder %s22, 0
      %p154 = por %p152, %p153
      %s156 = sadd.s32 %s155, 1
      %p159 = scmp.eq.s32.totalorder %s16, 1
      %p160 = scmp.ne.s32.totalorder %s155, %s157
      %p161 = scmp.eq.s32.totalorder %s16, 0
      %p162 = por %p160, %p161
      %p163 = scmp.ne.s32.totalorder %s155, %s157
      %p164 = scmp.eq.s32.totalorder %s21, 1
      %p165 = por %p163, %p164
      %p166 = scmp.ne.s32.totalorder %s157, %s158
      %p167 = scmp.eq.s32.totalorder %s21, 0
      %p168 = por %p166, %p167
      %p169 = scmp.ne.s32.totalorder %s157, %s158
      %p170 = scmp.eq.s32.totalorder %s22, 1
      %p171 = por %p169, %p170
      %p173 = scmp.ne.s32.totalorder %s158, %s172
      %p174 = scmp.eq.s32.totalorder %s22, 0
      %p175 = por %p173, %p174
      %s177 = sadd.s32 %s176, 1
      %p180 = scmp.eq.s32.totalorder %s16, 1
      %p181 = scmp.ne.s32.totalorder %s176, %s178
      %p182 = scmp.eq.s32.totalorder %s16, 0
      %p183 = por %p181, %p182
      %p184 = scmp.ne.s32.totalorder %s176, %s178
      %p185 = scmp.eq.s32.totalorder %s21, 1
      %p186 = por %p184, %p185
      %p187 = scmp.ne.s32.totalorder %s178, %s179
      %p188 = scmp.eq.s32.totalorder %s21, 0
      %p189 = por %p187, %p188
      %p190 = scmp.ne.s32.totalorder %s178, %s179
      %p191 = scmp.eq.s32.totalorder %s22, 1
      %p192 = por %p190, %p191
      %p194 = scmp.ne.s32.totalorder %s179, %s193
      %p195 = scmp.eq.s32.totalorder %s22, 0
      %p196 = por %p194, %p195
      %s198 = sadd.s32 %s197, 1
      %p201 = scmp.eq.s32.totalorder %s16, 1
      %p202 = scmp.ne.s32.totalorder %s197, %s199
      %p203 = scmp.eq.s32.totalorder %s16, 0
      %p204 = por %p202, %p203
      %p205 = scmp.ne.s32.totalorder %s197, %s199
      %p206 = scmp.eq.s32.totalorder %s21, 1
      %p207 = por %p205, %p206
      %p208 = scmp.ne.s32.totalorder %s199, %s200
      %p209 = scmp.eq.s32.totalorder %s21, 0
      %p210 = por %p208, %p209
      %p211 = scmp.ne.s32.totalorder %s199, %s200
      %p212 = scmp.eq.s32.totalorder %s22, 1
      %p213 = por %p211, %p212
      %p215 = scmp.ne.s32.totalorder %s200, %s214
      %p216 = scmp.eq.s32.totalorder %s22, 0
      %p217 = por %p215, %p216
      %s218 = ssub.s32 %s16, %s23
      %p219 = scmp.eq.s32.totalorder %s218, 0
      %s221 = sadd.s32 %s220, 1
      %s222 = scalar_select %p219, %s220, %s221
      %p225 = pneg %p219
      %p226 = scmp.eq.s32.totalorder %s16, 1
      %p227 = por %p225, %p226
      %p228 = scmp.ne.s32.totalorder %s220, %s223
      %p229 = scmp.eq.s32.totalorder %s16, 0
      %p230 = por %p228, %p229
      %p231 = scmp.ne.s32.totalorder %s220, %s223
      %p232 = scmp.eq.s32.totalorder %s21, 1
      %p233 = por %p231, %p232
      %p234 = scmp.ne.s32.totalorder %s223, %s224
      %p235 = scmp.eq.s32.totalorder %s21, 0
      %p236 = por %p234, %p235
      %p237 = scmp.ne.s32.totalorder %s223, %s224
      %p238 = scmp.eq.s32.totalorder %s22, 1
      %p239 = por %p237, %p238
      %p241 = scmp.ne.s32.totalorder %s224, %s240
      %p242 = scmp.eq.s32.totalorder %s22, 0
      %p243 = por %p241, %p242
      %p244 = scmp.le.s32.totalorder 1, %s16
      %p245 = scmp.lt.s32.totalorder %s16, 3
      %p246 = pnand %p244, %p245
      %p247 = pneg %p246
      // Predicated region
      $region9: #{tpu_custom_call.1} parent=5 // pred_check
        _
      $region10: #{tpu_custom_call.1} parent=5 // pred_check_branch
        %249 = sbr.rel (%p246) target = $region12
      $region11: #{tpu_custom_call.1} parent=5 // pred_region
        %s250 = ssub.s32 %s16, 1
        // Predicated region
        $region13: #{tpu_custom_call.1} parent=11 // pred_check
          %p251 = pneg %p63
        $region14: #{tpu_custom_call.1} parent=11 // pred_check_branch
          %253 = sbr.rel (%p251) target = $region16
        $region15: #{tpu_custom_call.1} parent=11 // pred_region
          _
        $region16: #{tpu_custom_call.1} parent=11 // pred_fallthru
          _
        // Predicated region
        $region17: #{tpu_custom_call.1} parent=11 // pred_check
          %p254 = pneg %p84
        $region18: #{tpu_custom_call.1} parent=11 // pred_check_branch
          %256 = sbr.rel (%p254) target = $region20
        $region19: #{tpu_custom_call.1} parent=11 // pred_region
          _
        $region20: #{tpu_custom_call.1} parent=11 // pred_fallthru
          _
        // Predicated region
        $region21: #{tpu_custom_call.1} parent=11 // pred_check
          %p257 = pneg %p105
        $region22: #{tpu_custom_call.1} parent=11 // pred_check_branch
          %259 = sbr.rel (%p257) target = $region24
        $region23: #{tpu_custom_call.1} parent=11 // pred_region
          _
        $region24: #{tpu_custom_call.1} parent=11 // pred_fallthru
          _
        // Predicated region
        $region25: #{tpu_custom_call.1} parent=11 // pred_check
          %p260 = pneg %p126
        $region26: #{tpu_custom_call.1} parent=11 // pred_check_branch
          %262 = sbr.rel (%p260) target = $region28
        $region27: #{tpu_custom_call.1} parent=11 // pred_region
          _
        $region28: #{tpu_custom_call.1} parent=11 // pred_fallthru
          _
        // Predicated region
        $region29: #{tpu_custom_call.1} parent=11 // pred_check
          %p263 = pneg %p147
        $region30: #{tpu_custom_call.1} parent=11 // pred_check_branch
          %265 = sbr.rel (%p263) target = $region32
        $region31: #{tpu_custom_call.1} parent=11 // pred_region
          %s267 = ssub.s32 1024, 1024
          %268 = vsyncadd [#allocation3], %s267
          %s269 = sshll.u32 [#allocation2], 4
          %s270 = int_to_ptr.vmem [resolvable:$true] %s269
          %275 = dma.hbm_to_vmem [thread:$0]  %s5, 1024, %s270, [#allocation3], 64, 64, 4
        $region32: #{tpu_custom_call.1} parent=11 // pred_fallthru
          _
        // Predicated region
        $region33: #{tpu_custom_call.1} parent=11 // pred_check
          %p276 = pneg %p168
        $region34: #{tpu_custom_call.1} parent=11 // pred_check_branch
          %278 = sbr.rel (%p276) target = $region36
        $region35: #{tpu_custom_call.1} parent=11 // pred_region
          _
        $region36: #{tpu_custom_call.1} parent=11 // pred_fallthru
          _
        // Predicated region
        $region37: #{tpu_custom_call.1} parent=11 // pred_check
          %p279 = pneg %p189
        $region38: #{tpu_custom_call.1} parent=11 // pred_check_branch
          %281 = sbr.rel (%p279) target = $region40
        $region39: #{tpu_custom_call.1} parent=11 // pred_region
          _
        $region40: #{tpu_custom_call.1} parent=11 // pred_fallthru
          _
        // Predicated region
        $region41: #{tpu_custom_call.1} parent=11 // pred_check
          %p282 = pneg %p210
        $region42: #{tpu_custom_call.1} parent=11 // pred_check_branch
          %284 = sbr.rel (%p282) target = $region44
        $region43: #{tpu_custom_call.1} parent=11 // pred_region
          _
        $region44: #{tpu_custom_call.1} parent=11 // pred_fallthru
          _
      $region12: #{tpu_custom_call.1} parent=5 // pred_fallthru
        _
      %p285 = scmp.lt.s32.totalorder %s16, 2
      // Predicated region
      $region45: #{tpu_custom_call.1} parent=5 // pred_check
        %p286 = pneg %p285
      $region46: #{tpu_custom_call.1} parent=5 // pred_check_branch
        %288 = sbr.rel (%p286) target = $region48
      $region47: #{tpu_custom_call.1} parent=5 // pred_region
        // Predicated region
        $region49: #{tpu_custom_call.1} parent=47 // pred_check
          %p289 = pneg %p36
        $region50: #{tpu_custom_call.1} parent=47 // pred_check_branch
          %291 = sbr.rel (%p289) target = $region52
        $region51: #{tpu_custom_call.1} parent=47 // pred_region
          %s292 = smul.u32 8, %s16
          %p293 = scmp.lt.s32.totalorder %s292, 15
          %s294 = scalar_select %p293, %s292, 15
          %s295 = smul.addr %s294, 8
          %s296 = scalar_lea.vmem %s0, %s295
          %s297 = smul.u32 8, %s16
        $region52: #{tpu_custom_call.1} parent=47 // pred_fallthru
          _
      $region48: #{tpu_custom_call.1} parent=5 // pred_fallthru
        _
      %p298 = scmp.le.s32.totalorder 1, %s16
      %p299 = scmp.lt.s32.totalorder %s16, 3
      %p300 = pnand %p298, %p299
      %p301 = pneg %p300
      // Predicated region
      $region53: #{tpu_custom_call.1} parent=5 // pred_check
        _
      $region54: #{tpu_custom_call.1} parent=5 // pred_check_branch
        %303 = sbr.rel (%p300) target = $region56
      $region55: #{tpu_custom_call.1} parent=5 // pred_region
        %s304 = ssub.s32 %s16, 1
        // Predicated region
        $region57: #{tpu_custom_call.1} parent=55 // pred_check
          %p305 = pneg %p147
        $region58: #{tpu_custom_call.1} parent=55 // pred_check_branch
          %307 = sbr.rel (%p305) target = $region60
        $region59: #{tpu_custom_call.1} parent=55 // pred_region
          %308 = dma.done [#allocation3], 1024
        $region60: #{tpu_custom_call.1} parent=55 // pred_fallthru
          _
        %s309 = smul.u32 8, %s21
        %p310 = scmp.lt.s32.totalorder %s309, 15
        %s311 = scalar_select %p310, %s309, 15
        %s312 = smul.addr %s311, 8
        %s313 = scalar_lea.vmem %s0, %s312
        %p314 = pneg %p42
        %p315 = pneg %p39
        %p316 = pneg %p63
        %p317 = pneg %p60
        %p318 = pneg %p84
        %p319 = pneg %p81
        %p320 = pneg %p105
        %p321 = pneg %p102
        %p322 = pneg %p126
        %p323 = pneg %p123
        %p324 = pneg %p147
        %p325 = pneg %p144
        %p326 = pneg %p168
        %p327 = pneg %p165
        %p328 = pneg %p189
        %p329 = pneg %p186
        %p330 = pneg %p210
        %p331 = pneg %p207
        %p332 = pneg %p236
        %p333 = pneg %p233
        %s334 = smul.u32 8, %s21
        %p335 = scmp.lt.s32.totalorder %s334, 15
        %s336 = scalar_select %p335, %s334, 15
        %s337 = smul.addr %s336, 8
        %s338 = scalar_lea.vmem %s9, %s337
        %s339 = smul.u32 8, %s21
        %p340 = scmp.lt.s32.totalorder %s339, 15
        %s341 = scalar_select %p340, %s339, 15
        %s342 = smul.addr %s341, 8
        %s343 = scalar_lea.vmem %s0, %s342
        %s344 = smul.u32 8, %s21
        %s345 = smul.u32 8, %s21
        %p346 = scmp.lt.s32.totalorder %s345, 15
        %s347 = scalar_select %p346, %s345, 15
        %s348 = smul.addr %s347, 8
        %s349 = scalar_lea.vmem %s9, %s348
        %s350 = smul.u32 8, %s21
        %v352 = vld [vmem:[%s343] sm:$0xff]
        %v353 = vld [vmem:[%s343 + $0x8] sm:$0xff]
        %v354 = vld [vmem:[%s343 + $0x10] sm:$0xff]
        %v355 = vld [vmem:[%s343 + $0x18] sm:$0xff]
        %v356 = vld [vmem:[%s343 + $0x20] sm:$0xff]
        %v357 = vld [vmem:[%s343 + $0x28] sm:$0xff]
        %v358 = vld [vmem:[%s343 + $0x30] sm:$0xff]
        %v359 = vld [vmem:[%s343 + $0x38] sm:$0xff]
        %v360 = vpack.c.bf16 %v353, %v352
        %v361 = vpack.c.bf16 %v355, %v354
        %v362 = vpack.c.bf16 %v357, %v356
        %v363 = vpack.c.bf16 %v359, %v358
        %v364 = vld [vmem:[%s2] sm:$0x1]
        %v365 = vld [vmem:[%s1] sm:$0x3]
        %v367 = vlaneseq
        %v368 = vshrl.u32 %v367, 7
        %v369 = vsub.s32 0, %v368
        %v370 = vrot.slane %v364, %v369
        %vm372 = vcmask 31744
        %v374 = vsel %vm372, %v360, 0
        %v377 = vsel %vm372, %v361, 0
        %v380 = vsel %vm372, %v362, 0
        %v383 = vsel %vm372, %v363, 0
        %vm385 = vcmask 1041408
        %v387 = vsel %vm385, %v365, 0
        %389 = vmatprep.subr.bf16.mxu0 0
        %390 = vmatpush1.bf16.msra.mxu0 %v387
        %391 = vmatprep.subr.bf16.mxu0 0
        %392 = vmatpush1.bf16.msra.mxu0 0
        %393 = vmatprep.subr.bf16.mxu0 0
        %394 = vmatpush1.bf16.msra.mxu0 0
        %395 = vmatprep.subr.bf16.mxu0 0
        %396 = vmatpush1.bf16.msra.mxu0 0
        %397 = vmatprep.subr.bf16.mxu0 0
        %398 = vmatpush1.bf16.msra.mxu0 0
        %399 = vmatprep.subr.bf16.mxu0 0
        %400 = vmatpush1.bf16.msra.mxu0 0
        %401 = vmatprep.subr.bf16.mxu0 0
        %402 = vmatpush1.bf16.msra.mxu0 0
        %403 = vmatprep.subr.bf16.mxu0 0
        %404 = vmatpush1.bf16.msra.mxu0 0
        %405 = vmatprep.subr.bf16.mxu0 0
        %406 = vmatpush1.bf16.msra.mxu0 0
        %407 = vmatprep.subr.bf16.mxu0 0
        %408 = vmatpush1.bf16.msra.mxu0 0
        %409 = vmatprep.subr.bf16.mxu0 0
        %410 = vmatpush1.bf16.msra.mxu0 0
        %411 = vmatprep.subr.bf16.mxu0 0
        %412 = vmatpush1.bf16.msra.mxu0 0
        %413 = vmatprep.subr.bf16.mxu0 0
        %414 = vmatpush1.bf16.msra.mxu0 0
        %415 = vmatprep.subr.bf16.mxu0 0
        %416 = vmatpush1.bf16.msra.mxu0 0
        %417 = vmatprep.subr.bf16.mxu0 0
        %418 = vmatpush1.bf16.msra.mxu0 0
        %419 = vmatprep.subr.bf16.mxu0 0
        %420 = vmatpush1.bf16.msra.mxu0 0
        %421 = vmatprep.mubr.bf16.mxu0 0
        %422 = vmatmul.mubr.bf16.gmra.mrb[0].mxu0 %v374
        %v423 = vpop.f32.mrb[0].mxu0
        %v424 = vadd.f32 %v370, %v423
        %v425 = vpop.f32.mrb[0].mxu0
        %v426 = vpop.f32.mrb[0].mxu0
        %v427 = vadd.f32 %v370, %v426
        %v428 = vpop.f32.mrb[0].mxu0
        %429 = vmatprep.mubr.bf16.mxu0 0
        %430 = vmatmul.mubr.bf16.gmra.mrb[0].mxu0 %v377
        %v431 = vpop.f32.mrb[0].mxu0
        %v432 = vadd.f32 %v370, %v431
        %v433 = vpop.f32.mrb[0].mxu0
        %v434 = vpop.f32.mrb[0].mxu0
        %v435 = vadd.f32 %v370, %v434
        %v436 = vpop.f32.mrb[0].mxu0
        %437 = vmatprep.mubr.bf16.mxu0 0
        %438 = vmatmul.mubr.bf16.gmra.mrb[0].mxu0 %v380
        %v439 = vpop.f32.mrb[0].mxu0
        %v440 = vadd.f32 %v370, %v439
        %v441 = vpop.f32.mrb[0].mxu0
        %v442 = vpop.f32.mrb[0].mxu0
        %v443 = vadd.f32 %v370, %v442
        %v444 = vpop.f32.mrb[0].mxu0
        %445 = vmatprep.mubr.bf16.mxu0 0
        %446 = vmatmul.mubr.bf16.gmra.mrb[0].mxu0 %v383
        %v447 = vpop.f32.mrb[0].mxu0
        %v448 = vadd.f32 %v370, %v447
        %v449 = vpop.f32.mrb[0].mxu0
        %v450 = vpop.f32.mrb[0].mxu0
        %v451 = vadd.f32 %v370, %v450
        %v452 = vpop.f32.mrb[0].mxu0
        %453 = vdwg.mxu0
        %v454 = vmax.f32 %v424, 0.0
        %v455 = vmax.f32 %v427, 0.0
        %v456 = vmax.f32 %v432, 0.0
        %v457 = vmax.f32 %v435, 0.0
        %v458 = vmax.f32 %v440, 0.0
        %v459 = vmax.f32 %v443, 0.0
        %v460 = vmax.f32 %v448, 0.0
        %v461 = vmax.f32 %v451, 0.0
        %v462 = vpack.c.bf16 %v455, %v454
        %v463 = vpack.c.bf16 %v457, %v456
        %v464 = vpack.c.bf16 %v459, %v458
        %v465 = vpack.c.bf16 %v461, %v460
        %v466 = vld [vmem:[%s4] sm:$0x1]
        %v467 = vld [vmem:[%s3] sm:$0xf]
        %v468 = vld [vmem:[%s3 + $0x4] sm:$0xf]
        %v469 = vld [vmem:[%s3 + $0x8] sm:$0xf]
        %v470 = vld [vmem:[%s3 + $0xc] sm:$0xf]
        %v471 = vld [vmem:[%s3 + $0x10] sm:$0xf]
        %v472 = vld [vmem:[%s3 + $0x14] sm:$0xf]
        %v473 = vld [vmem:[%s3 + $0x18] sm:$0xf]
        %v474 = vld [vmem:[%s3 + $0x1c] sm:$0xf]
        %v475 = vld [vmem:[%s3 + $0x20] sm:$0xf]
        %v476 = vld [vmem:[%s3 + $0x24] sm:$0xf]
        %v477 = vld [vmem:[%s3 + $0x28] sm:$0xf]
        %v478 = vld [vmem:[%s3 + $0x2c] sm:$0xf]
        %v479 = vld [vmem:[%s3 + $0x30] sm:$0xf]
        %v480 = vld [vmem:[%s3 + $0x34] sm:$0xf]
        %v481 = vld [vmem:[%s3 + $0x38] sm:$0xf]
        %v482 = vld [vmem:[%s3 + $0x3c] sm:$0xf]
        %v484 = vlaneseq
        %v485 = vshrl.u32 %v484, 7
        %v486 = vsub.s32 0, %v485
        %v487 = vrot.slane %v466, %v486
        %v505 = vunpack.c.l.b16 %v467
        %v506 = vunpack.c.l.b16 %v468
        %v507 = vunpack.c.l.b16 %v469
        %v508 = vunpack.c.l.b16 %v470
        %v509 = vunpack.c.l.b16 %v471
        %v510 = vunpack.c.l.b16 %v472
        %v511 = vunpack.c.l.b16 %v473
        %v512 = vunpack.c.l.b16 %v474
        %v513 = vunpack.c.l.b16 %v475
        %v514 = vunpack.c.l.b16 %v476
        %v515 = vunpack.c.l.b16 %v477
        %v516 = vunpack.c.l.b16 %v478
        %v517 = vunpack.c.l.b16 %v479
        %v518 = vunpack.c.l.b16 %v480
        %v519 = vunpack.c.l.b16 %v481
        %v520 = vunpack.c.l.b16 %v482
        %v521 = vpack.c.b16 %v506, %v505
        %v522 = vpack.c.b16 %v508, %v507
        %v523 = vpack.c.b16 %v510, %v509
        %v524 = vpack.c.b16 %v512, %v511
        %v525 = vpack.c.b16 %v514, %v513
        %v526 = vpack.c.b16 %v516, %v515
        %v527 = vpack.c.b16 %v518, %v517
        %v528 = vpack.c.b16 %v520, %v519
        %537 = vmatprep.subr.bf16.mxu0 0
        %538 = vmatpush1.bf16.msra.mxu0 %v521
        %539 = vmatprep.subr.bf16.mxu0 0
        %540 = vmatpush1.bf16.msra.mxu0 %v522
        %541 = vmatprep.subr.bf16.mxu0 0
        %542 = vmatpush1.bf16.msra.mxu0 %v523
        %543 = vmatprep.subr.bf16.mxu0 0
        %544 = vmatpush1.bf16.msra.mxu0 %v524
        %545 = vmatprep.subr.bf16.mxu0 0
        %546 = vmatpush1.bf16.msra.mxu0 %v525
        %547 = vmatprep.subr.bf16.mxu0 0
        %548 = vmatpush1.bf16.msra.mxu0 %v526
        %549 = vmatprep.subr.bf16.mxu0 0
        %550 = vmatpush1.bf16.msra.mxu0 %v527
        %551 = vmatprep.subr.bf16.mxu0 0
        %552 = vmatpush1.bf16.msra.mxu0 %v528
        %553 = vmatprep.subr.bf16.mxu0 0
        %554 = vmatpush1.bf16.msra.mxu0 0
        %555 = vmatprep.subr.bf16.mxu0 0
        %556 = vmatpush1.bf16.msra.mxu0 0
        %557 = vmatprep.subr.bf16.mxu0 0
        %558 = vmatpush1.bf16.msra.mxu0 0
        %559 = vmatprep.subr.bf16.mxu0 0
        %560 = vmatpush1.bf16.msra.mxu0 0
        %561 = vmatprep.subr.bf16.mxu0 0
        %562 = vmatpush1.bf16.msra.mxu0 0
        %563 = vmatprep.subr.bf16.mxu0 0
        %564 = vmatpush1.bf16.msra.mxu0 0
        %565 = vmatprep.subr.bf16.mxu0 0
        %566 = vmatpush1.bf16.msra.mxu0 0
        %567 = vmatprep.subr.bf16.mxu0 0
        %568 = vmatpush1.bf16.msra.mxu0 0
        %569 = vmatprep.mubr.bf16.mxu0 0
        %570 = vmatmul.mubr.bf16.gmra.mrb[0].mxu0 %v462
        %v571 = vpop.f32.mrb[0].mxu0
        %v572 = vadd.f32 %v487, %v571
        %v573 = vpop.f32.mrb[0].mxu0
        %v574 = vpop.f32.mrb[0].mxu0
        %v575 = vadd.f32 %v487, %v574
        %v576 = vpop.f32.mrb[0].mxu0
        %577 = vmatprep.mubr.bf16.mxu0 0
        %578 = vmatmul.mubr.bf16.gmra.mrb[0].mxu0 %v463
        %v579 = vpop.f32.mrb[0].mxu0
        %v580 = vadd.f32 %v487, %v579
        %v581 = vpop.f32.mrb[0].mxu0
        %v582 = vpop.f32.mrb[0].mxu0
        %v583 = vadd.f32 %v487, %v582
        %v584 = vpop.f32.mrb[0].mxu0
        %585 = vmatprep.mubr.bf16.mxu0 0
        %586 = vmatmul.mubr.bf16.gmra.mrb[0].mxu0 %v464
        %v587 = vpop.f32.mrb[0].mxu0
        %v588 = vadd.f32 %v487, %v587
        %v589 = vpop.f32.mrb[0].mxu0
        %v590 = vpop.f32.mrb[0].mxu0
        %v591 = vadd.f32 %v487, %v590
        %v592 = vpop.f32.mrb[0].mxu0
        %593 = vmatprep.mubr.bf16.mxu0 0
        %594 = vmatmul.mubr.bf16.gmra.mrb[0].mxu0 %v465
        %v595 = vpop.f32.mrb[0].mxu0
        %v596 = vadd.f32 %v487, %v595
        %v597 = vpop.f32.mrb[0].mxu0
        %v598 = vpop.f32.mrb[0].mxu0
        %v599 = vadd.f32 %v487, %v598
        %v600 = vpop.f32.mrb[0].mxu0
        %601 = vdwg.mxu0
        %v602 = vmax.f32 %v572, 0.0
        %v603 = vmax.f32 %v575, 0.0
        %v604 = vmax.f32 %v580, 0.0
        %v605 = vmax.f32 %v583, 0.0
        %v606 = vmax.f32 %v588, 0.0
        %v607 = vmax.f32 %v591, 0.0
        %v608 = vmax.f32 %v596, 0.0
        %v609 = vmax.f32 %v599, 0.0
        %v610 = vpack.c.bf16 %v603, %v602
        %v611 = vpack.c.bf16 %v605, %v604
        %v612 = vpack.c.bf16 %v607, %v606
        %v613 = vpack.c.bf16 %v609, %v608
        %v614 = vld [vmem:[%s6] sm:$0x1]
        %v615 = vld [vmem:[#allocation2] sm:$0xf]
        %v616 = vld [vmem:[#allocation2 + $0x4] sm:$0xf]
        %v617 = vld [vmem:[#allocation2 + $0x8] sm:$0xf]
        %v618 = vld [vmem:[#allocation2 + $0xc] sm:$0xf]
        %v619 = vld [vmem:[#allocation2 + $0x10] sm:$0xf]
        %v620 = vld [vmem:[#allocation2 + $0x14] sm:$0xf]
        %v621 = vld [vmem:[#allocation2 + $0x18] sm:$0xf]
        %v622 = vld [vmem:[#allocation2 + $0x1c] sm:$0xf]
        %v623 = vld [vmem:[#allocation2 + $0x20] sm:$0xf]
        %v624 = vld [vmem:[#allocation2 + $0x24] sm:$0xf]
        %v625 = vld [vmem:[#allocation2 + $0x28] sm:$0xf]
        %v626 = vld [vmem:[#allocation2 + $0x2c] sm:$0xf]
        %v627 = vld [vmem:[#allocation2 + $0x30] sm:$0xf]
        %v628 = vld [vmem:[#allocation2 + $0x34] sm:$0xf]
        %v629 = vld [vmem:[#allocation2 + $0x38] sm:$0xf]
        %v630 = vld [vmem:[#allocation2 + $0x3c] sm:$0xf]
        %v632 = vlaneseq
        %v633 = vshrl.u32 %v632, 7
        %v634 = vsub.s32 0, %v633
        %v635 = vrot.slane %v614, %v634
        %v653 = vunpack.c.l.b16 %v615
        %v654 = vunpack.c.l.b16 %v616
        %v655 = vunpack.c.l.b16 %v617
        %v656 = vunpack.c.l.b16 %v618
        %v657 = vunpack.c.l.b16 %v619
        %v658 = vunpack.c.l.b16 %v620
        %v659 = vunpack.c.l.b16 %v621
        %v660 = vunpack.c.l.b16 %v622
        %v661 = vunpack.c.l.b16 %v623
        %v662 = vunpack.c.l.b16 %v624
        %v663 = vunpack.c.l.b16 %v625
        %v664 = vunpack.c.l.b16 %v626
        %v665 = vunpack.c.l.b16 %v627
        %v666 = vunpack.c.l.b16 %v628
        %v667 = vunpack.c.l.b16 %v629
        %v668 = vunpack.c.l.b16 %v630
        %v669 = vpack.c.b16 %v654, %v653
        %v670 = vpack.c.b16 %v656, %v655
        %v671 = vpack.c.b16 %v658, %v657
        %v672 = vpack.c.b16 %v660, %v659
        %v673 = vpack.c.b16 %v662, %v661
        %v674 = vpack.c.b16 %v664, %v663
        %v675 = vpack.c.b16 %v666, %v665
        %v676 = vpack.c.b16 %v668, %v667
        %685 = vmatprep.subr.bf16.mxu0 0
        %686 = vmatpush1.bf16.msra.mxu0 %v669
        %687 = vmatprep.subr.bf16.mxu0 0
        %688 = vmatpush1.bf16.msra.mxu0 %v670
        %689 = vmatprep.subr.bf16.mxu0 0
        %690 = vmatpush1.bf16.msra.mxu0 %v671
        %691 = vmatprep.subr.bf16.mxu0 0
        %692 = vmatpush1.bf16.msra.mxu0 %v672
        %693 = vmatprep.subr.bf16.mxu0 0
        %694 = vmatpush1.bf16.msra.mxu0 %v673
        %695 = vmatprep.subr.bf16.mxu0 0
        %696 = vmatpush1.bf16.msra.mxu0 %v674
        %697 = vmatprep.subr.bf16.mxu0 0
        %698 = vmatpush1.bf16.msra.mxu0 %v675
        %699 = vmatprep.subr.bf16.mxu0 0
        %700 = vmatpush1.bf16.msra.mxu0 %v676
        %701 = vmatprep.subr.bf16.mxu0 0
        %702 = vmatpush1.bf16.msra.mxu0 0
        %703 = vmatprep.subr.bf16.mxu0 0
        %704 = vmatpush1.bf16.msra.mxu0 0
        %705 = vmatprep.subr.bf16.mxu0 0
        %706 = vmatpush1.bf16.msra.mxu0 0
        %707 = vmatprep.subr.bf16.mxu0 0
        %708 = vmatpush1.bf16.msra.mxu0 0
        %709 = vmatprep.subr.bf16.mxu0 0
        %710 = vmatpush1.bf16.msra.mxu0 0
        %711 = vmatprep.subr.bf16.mxu0 0
        %712 = vmatpush1.bf16.msra.mxu0 0
        %713 = vmatprep.subr.bf16.mxu0 0
        %714 = vmatpush1.bf16.msra.mxu0 0
        %715 = vmatprep.subr.bf16.mxu0 0
        %716 = vmatpush1.bf16.msra.mxu0 0
        %717 = vmatprep.mubr.bf16.mxu0 0
        %718 = vmatmul.mubr.bf16.gmra.mrb[0].mxu0 %v610
        %v719 = vpop.f32.mrb[0].mxu0
        %v720 = vadd.f32 %v635, %v719
        %v721 = vpop.f32.mrb[0].mxu0
        %v722 = vpop.f32.mrb[0].mxu0
        %v723 = vadd.f32 %v635, %v722
        %v724 = vpop.f32.mrb[0].mxu0
        %725 = vmatprep.mubr.bf16.mxu0 0
        %726 = vmatmul.mubr.bf16.gmra.mrb[0].mxu0 %v611
        %v727 = vpop.f32.mrb[0].mxu0
        %v728 = vadd.f32 %v635, %v727
        %v729 = vpop.f32.mrb[0].mxu0
        %v730 = vpop.f32.mrb[0].mxu0
        %v731 = vadd.f32 %v635, %v730
        %v732 = vpop.f32.mrb[0].mxu0
        %733 = vmatprep.mubr.bf16.mxu0 0
        %734 = vmatmul.mubr.bf16.gmra.mrb[0].mxu0 %v612
        %v735 = vpop.f32.mrb[0].mxu0
        %v736 = vadd.f32 %v635, %v735
        %v737 = vpop.f32.mrb[0].mxu0
        %v738 = vpop.f32.mrb[0].mxu0
        %v739 = vadd.f32 %v635, %v738
        %v740 = vpop.f32.mrb[0].mxu0
        %741 = vmatprep.mubr.bf16.mxu0 0
        %742 = vmatmul.mubr.bf16.gmra.mrb[0].mxu0 %v613
        %v743 = vpop.f32.mrb[0].mxu0
        %v744 = vadd.f32 %v635, %v743
        %v745 = vpop.f32.mrb[0].mxu0
        %v746 = vpop.f32.mrb[0].mxu0
        %v747 = vadd.f32 %v635, %v746
        %v748 = vpop.f32.mrb[0].mxu0
        %749 = vdwg.mxu0
        %v750 = vmax.f32 %v720, 0.0
        %v751 = vmax.f32 %v723, 0.0
        %v752 = vmax.f32 %v728, 0.0
        %v753 = vmax.f32 %v731, 0.0
        %v754 = vmax.f32 %v736, 0.0
        %v755 = vmax.f32 %v739, 0.0
        %v756 = vmax.f32 %v744, 0.0
        %v757 = vmax.f32 %v747, 0.0
        %v758 = vpack.c.bf16 %v751, %v750
        %v759 = vpack.c.bf16 %v753, %v752
        %v760 = vpack.c.bf16 %v755, %v754
        %v761 = vpack.c.bf16 %v757, %v756
        %v762 = vld [vmem:[%s8] sm:$0x1]
        %v763 = vld [vmem:[%s7] sm:$0xf]
        %v764 = vld [vmem:[%s7 + $0x4] sm:$0xf]
        %v765 = vld [vmem:[%s7 + $0x8] sm:$0xf]
        %v766 = vld [vmem:[%s7 + $0xc] sm:$0xf]
        %v767 = vld [vmem:[%s7 + $0x10] sm:$0xf]
        %v768 = vld [vmem:[%s7 + $0x14] sm:$0xf]
        %v769 = vld [vmem:[%s7 + $0x18] sm:$0xf]
        %v770 = vld [vmem:[%s7 + $0x1c] sm:$0xf]
        %v771 = vld [vmem:[%s7 + $0x20] sm:$0xf]
        %v772 = vld [vmem:[%s7 + $0x24] sm:$0xf]
        %v773 = vld [vmem:[%s7 + $0x28] sm:$0xf]
        %v774 = vld [vmem:[%s7 + $0x2c] sm:$0xf]
        %v775 = vld [vmem:[%s7 + $0x30] sm:$0xf]
        %v776 = vld [vmem:[%s7 + $0x34] sm:$0xf]
        %v777 = vld [vmem:[%s7 + $0x38] sm:$0xf]
        %v778 = vld [vmem:[%s7 + $0x3c] sm:$0xf]
        %v779 = vld [vmem:[%s7 + $0x40] sm:$0x3]
        %v781 = vsel %vm385, %v779, 0
        %783 = vmatprep.subr.bf16.mxu0 0
        %784 = vmatpush1.bf16.msra.mxu0 %v781
        %785 = vmatprep.subr.bf16.mxu0 0
        %786 = vmatpush1.bf16.msra.mxu0 0
        %787 = vmatprep.subr.bf16.mxu0 0
        %788 = vmatpush1.bf16.msra.mxu0 0
        %789 = vmatprep.subr.bf16.mxu0 0
        %790 = vmatpush1.bf16.msra.mxu0 0
        %791 = vmatprep.subr.bf16.mxu0 0
        %792 = vmatpush1.bf16.msra.mxu0 0
        %793 = vmatprep.subr.bf16.mxu0 0
        %794 = vmatpush1.bf16.msra.mxu0 0
        %795 = vmatprep.subr.bf16.mxu0 0
        %796 = vmatpush1.bf16.msra.mxu0 0
        %797 = vmatprep.subr.bf16.mxu0 0
        %798 = vmatpush1.bf16.msra.mxu0 0
        %799 = vmatprep.subr.bf16.mxu0 0
        %800 = vmatpush1.bf16.msra.mxu0 0
        %801 = vmatprep.subr.bf16.mxu0 0
        %802 = vmatpush1.bf16.msra.mxu0 0
        %803 = vmatprep.subr.bf16.mxu0 0
        %804 = vmatpush1.bf16.msra.mxu0 0
        %805 = vmatprep.subr.bf16.mxu0 0
        %806 = vmatpush1.bf16.msra.mxu0 0
        %807 = vmatprep.subr.bf16.mxu0 0
        %808 = vmatpush1.bf16.msra.mxu0 0
        %809 = vmatprep.subr.bf16.mxu0 0
        %810 = vmatpush1.bf16.msra.mxu0 0
        %811 = vmatprep.subr.bf16.mxu0 0
        %812 = vmatpush1.bf16.msra.mxu0 0
        %813 = vmatprep.subr.bf16.mxu0 0
        %814 = vmatpush1.bf16.msra.mxu0 0
        %815 = vmatprep.mubr.bf16.mxu0 0
        %816 = vmatmul.mubr.bf16.gmra.mrb[0].mxu0 %v374
        %v817 = vpop.f32.mrb[0].mxu0
        %v818 = vadd.f32 0.0, %v817
        %v819 = vpop.f32.mrb[0].mxu0
        %v820 = vpop.f32.mrb[0].mxu0
        %v821 = vadd.f32 0.0, %v820
        %v822 = vpop.f32.mrb[0].mxu0
        %823 = vmatprep.mubr.bf16.mxu0 0
        %824 = vmatmul.mubr.bf16.gmra.mrb[0].mxu0 %v377
        %v825 = vpop.f32.mrb[0].mxu0
        %v826 = vadd.f32 0.0, %v825
        %v827 = vpop.f32.mrb[0].mxu0
        %v828 = vpop.f32.mrb[0].mxu0
        %v829 = vadd.f32 0.0, %v828
        %v830 = vpop.f32.mrb[0].mxu0
        %831 = vmatprep.mubr.bf16.mxu0 0
        %832 = vmatmul.mubr.bf16.gmra.mrb[0].mxu0 %v380
        %v833 = vpop.f32.mrb[0].mxu0
        %v834 = vadd.f32 0.0, %v833
        %v835 = vpop.f32.mrb[0].mxu0
        %v836 = vpop.f32.mrb[0].mxu0
        %v837 = vadd.f32 0.0, %v836
        %v838 = vpop.f32.mrb[0].mxu0
        %839 = vmatprep.mubr.bf16.mxu0 0
        %840 = vmatmul.mubr.bf16.gmra.mrb[0].mxu0 %v383
        %v841 = vpop.f32.mrb[0].mxu0
        %v842 = vadd.f32 0.0, %v841
        %v843 = vpop.f32.mrb[0].mxu0
        %v844 = vpop.f32.mrb[0].mxu0
        %v845 = vadd.f32 0.0, %v844
        %v846 = vpop.f32.mrb[0].mxu0
        %847 = vdwg.mxu0
        %v864 = vunpack.c.l.b16 %v763
        %v865 = vunpack.c.l.b16 %v764
        %v866 = vunpack.c.l.b16 %v765
        %v867 = vunpack.c.l.b16 %v766
        %v868 = vunpack.c.l.b16 %v767
        %v869 = vunpack.c.l.b16 %v768
        %v870 = vunpack.c.l.b16 %v769
        %v871 = vunpack.c.l.b16 %v770
        %v872 = vunpack.c.l.b16 %v771
        %v873 = vunpack.c.l.b16 %v772
        %v874 = vunpack.c.l.b16 %v773
        %v875 = vunpack.c.l.b16 %v774
        %v876 = vunpack.c.l.b16 %v775
        %v877 = vunpack.c.l.b16 %v776
        %v878 = vunpack.c.l.b16 %v777
        %v879 = vunpack.c.l.b16 %v778
        %v880 = vpack.c.b16 %v865, %v864
        %v881 = vpack.c.b16 %v867, %v866
        %v882 = vpack.c.b16 %v869, %v868
        %v883 = vpack.c.b16 %v871, %v870
        %v884 = vpack.c.b16 %v873, %v872
        %v885 = vpack.c.b16 %v875, %v874
        %v886 = vpack.c.b16 %v877, %v876
        %v887 = vpack.c.b16 %v879, %v878
        %896 = vmatprep.subr.bf16.mxu0 0
        %897 = vmatpush1.bf16.msra.mxu0 %v880
        %898 = vmatprep.subr.bf16.mxu0 0
        %899 = vmatpush1.bf16.msra.mxu0 %v881
        %900 = vmatprep.subr.bf16.mxu0 0
        %901 = vmatpush1.bf16.msra.mxu0 %v882
        %902 = vmatprep.subr.bf16.mxu0 0
        %903 = vmatpush1.bf16.msra.mxu0 %v883
        %904 = vmatprep.subr.bf16.mxu0 0
        %905 = vmatpush1.bf16.msra.mxu0 %v884
        %906 = vmatprep.subr.bf16.mxu0 0
        %907 = vmatpush1.bf16.msra.mxu0 %v885
        %908 = vmatprep.subr.bf16.mxu0 0
        %909 = vmatpush1.bf16.msra.mxu0 %v886
        %910 = vmatprep.subr.bf16.mxu0 0
        %911 = vmatpush1.bf16.msra.mxu0 %v887
        %912 = vmatprep.subr.bf16.mxu0 0
        %913 = vmatpush1.bf16.msra.mxu0 0
        %914 = vmatprep.subr.bf16.mxu0 0
        %915 = vmatpush1.bf16.msra.mxu0 0
        %916 = vmatprep.subr.bf16.mxu0 0
        %917 = vmatpush1.bf16.msra.mxu0 0
        %918 = vmatprep.subr.bf16.mxu0 0
        %919 = vmatpush1.bf16.msra.mxu0 0
        %920 = vmatprep.subr.bf16.mxu0 0
        %921 = vmatpush1.bf16.msra.mxu0 0
        %922 = vmatprep.subr.bf16.mxu0 0
        %923 = vmatpush1.bf16.msra.mxu0 0
        %924 = vmatprep.subr.bf16.mxu0 0
        %925 = vmatpush1.bf16.msra.mxu0 0
        %926 = vmatprep.subr.bf16.mxu0 0
        %927 = vmatpush1.bf16.msra.mxu0 0
        %928 = vmatprep.mubr.bf16.mxu0 0
        %929 = vmatmul.mubr.bf16.gmra.mrb[0].mxu0 %v758
        %v930 = vpop.f32.mrb[0].mxu0
        %v931 = vadd.f32 %v818, %v930
        %v932 = vpop.f32.mrb[0].mxu0
        %v933 = vpop.f32.mrb[0].mxu0
        %v934 = vadd.f32 %v821, %v933
        %v935 = vpop.f32.mrb[0].mxu0
        %936 = vmatprep.mubr.bf16.mxu0 0
        %937 = vmatmul.mubr.bf16.gmra.mrb[0].mxu0 %v759
        %v938 = vpop.f32.mrb[0].mxu0
        %v939 = vadd.f32 %v826, %v938
        %v940 = vpop.f32.mrb[0].mxu0
        %v941 = vpop.f32.mrb[0].mxu0
        %v942 = vadd.f32 %v829, %v941
        %v943 = vpop.f32.mrb[0].mxu0
        %944 = vmatprep.mubr.bf16.mxu0 0
        %945 = vmatmul.mubr.bf16.gmra.mrb[0].mxu0 %v760
        %v946 = vpop.f32.mrb[0].mxu0
        %v947 = vadd.f32 %v834, %v946
        %v948 = vpop.f32.mrb[0].mxu0
        %v949 = vpop.f32.mrb[0].mxu0
        %v950 = vadd.f32 %v837, %v949
        %v951 = vpop.f32.mrb[0].mxu0
        %952 = vmatprep.mubr.bf16.mxu0 0
        %953 = vmatmul.mubr.bf16.gmra.mrb[0].mxu0 %v761
        %v954 = vpop.f32.mrb[0].mxu0
        %v955 = vadd.f32 %v842, %v954
        %v956 = vpop.f32.mrb[0].mxu0
        %v957 = vpop.f32.mrb[0].mxu0
        %v958 = vadd.f32 %v845, %v957
        %v959 = vpop.f32.mrb[0].mxu0
        %960 = vdwg.mxu0
        %v962 = vlaneseq
        %v963 = vshrl.u32 %v962, 7
        %v964 = vsub.s32 0, %v963
        %v965 = vrot.slane %v762, %v964
        %v967 = vadd.f32 %v931, %v965
        %v968 = vadd.f32 %v934, %v965
        %v969 = vadd.f32 %v939, %v965
        %v970 = vadd.f32 %v942, %v965
        %v971 = vadd.f32 %v947, %v965
        %v972 = vadd.f32 %v950, %v965
        %v973 = vadd.f32 %v955, %v965
        %v974 = vadd.f32 %v958, %v965
        %v975 = vmax.f32 %v967, 0.0
        %v976 = vmax.f32 %v968, 0.0
        %v977 = vmax.f32 %v969, 0.0
        %v978 = vmax.f32 %v970, 0.0
        %v979 = vmax.f32 %v971, 0.0
        %v980 = vmax.f32 %v972, 0.0
        %v981 = vmax.f32 %v973, 0.0
        %v982 = vmax.f32 %v974, 0.0
        %983 = vst.msk [vmem:[%s349] sm:$0xff] %vm372, %v975
        %984 = vst.msk [vmem:[%s349 + $0x8] sm:$0xff] %vm372, %v976
        %985 = vst.msk [vmem:[%s349 + $0x10] sm:$0xff] %vm372, %v977
        %986 = vst.msk [vmem:[%s349 + $0x18] sm:$0xff] %vm372, %v978
        %987 = vst.msk [vmem:[%s349 + $0x20] sm:$0xff] %vm372, %v979
        %988 = vst.msk [vmem:[%s349 + $0x28] sm:$0xff] %vm372, %v980
        %989 = vst.msk [vmem:[%s349 + $0x30] sm:$0xff] %vm372, %v981
        %990 = vst.msk [vmem:[%s349 + $0x38] sm:$0xff] %vm372, %v982
        %s991 = smul.u32 8, %s21
        %p992 = scmp.lt.s32.totalorder %s991, 15
        %s993 = scalar_select %p992, %s991, 15
        %s994 = smul.addr %s993, 8
        %s995 = scalar_lea.vmem %s9, %s994
        // Predicated region
        $region61: #{tpu_custom_call.1} parent=55 // pred_check
          %p996 = pneg %p233
        $region62: #{tpu_custom_call.1} parent=55 // pred_check_branch
          %998 = sbr.rel (%p996) target = $region64
        $region63: #{tpu_custom_call.1} parent=55 // pred_region
          %s999 = smul.u32 8, %s21
        $region64: #{tpu_custom_call.1} parent=55 // pred_fallthru
          _
      $region56: #{tpu_custom_call.1} parent=5 // pred_fallthru
        _
      %p1000 = scmp.le.s32.totalorder 2, %s16
      // Predicated region
      $region65: #{tpu_custom_call.1} parent=5 // pred_check
        %p1001 = pneg %p1000
      $region66: #{tpu_custom_call.1} parent=5 // pred_check_branch
        %1003 = sbr.rel (%p1001) target = $region68
      $region67: #{tpu_custom_call.1} parent=5 // pred_region
        %s1004 = ssub.s32 %s16, 2
        // Predicated region
        $region69: #{tpu_custom_call.1} parent=67 // pred_check
          %p1005 = pneg %p239
        $region70: #{tpu_custom_call.1} parent=67 // pred_check_branch
          %1007 = sbr.rel (%p1005) target = $region72
        $region71: #{tpu_custom_call.1} parent=67 // pred_region
          %s1008 = smul.u32 8, %s22
          %p1009 = scmp.lt.s32.totalorder %s1008, 15
          %s1010 = scalar_select %p1009, %s1008, 15
          %s1011 = smul.addr %s1010, 8
          %s1012 = scalar_lea.vmem %s9, %s1011
        $region72: #{tpu_custom_call.1} parent=67 // pred_fallthru
          _
      $region68: #{tpu_custom_call.1} parent=5 // pred_fallthru
        _
    $region6: #{tpu_custom_call.1} parent=1 // loop_footer
      %s20 = sadd.s32 1, %s16
    $region7: #{tpu_custom_call.1} parent=1 // loop_footer_branch
      %15 = sbr.rel target = $region3
    $region8: #{tpu_custom_call.1} parent=1 // loop_exit
      _
    %1013 = vsyncpa [#allocation3], 1
    %s1014 = scalar_lea.sflag [#allocation3], 1
    %1015 = vsyncpa %s1014, 1

// kernel: tpu_custom_call.1
$region0: #{tpu_custom_call.1}
  #allocation0 [shape = 'u32[]', space=smem, size = 0x4, offset = 0x4, fixed_abs, tag = 'smem constant byte address 0x4 - core index']
  #allocation1 [shape = 'u32[144,128]{1,0:T(1,128)}', space=vmem, size = 0x12000, scoped, tag = 'internal scratch']
  %s0 = inlined_call_operand.vmem [shape: f32[128,4], index: 0, kind: input, shape index: {}]
  %s1 = inlined_call_operand.vmem [shape: bf16[4,128], index: 1, kind: input, shape index: {}]
  %s2 = inlined_call_operand.vmem [shape: f32[1,128], index: 2, kind: input, shape index: {}]
  %s3 = inlined_call_operand.vmem [shape: bf16[128,128], index: 3, kind: input, shape index: {}]
  %s4 = inlined_call_operand.vmem [shape: f32[1,128], index: 4, kind: input, shape index: {}]
  %s5 = inlined_call_operand.hbm [shape: bf16[128,128], index: 5, kind: input, shape index: {}]
  %s6 = inlined_call_operand.vmem [shape: f32[1,128], index: 6, kind: input, shape index: {}]
  %s7 = inlined_call_operand.vmem [shape: bf16[132,128], index: 7, kind: input, shape index: {}]
  %s8 = inlined_call_operand.vmem [shape: f32[1,128], index: 8, kind: input, shape index: {}]
  %s9 = inlined_call_operand.vmem [shape: f32[128,4], index: 9, kind: output, shape index: {}]
  %s10 = sld [smem:[#allocation0]]
  $region73: #{tpu_custom_call.1} parent=0
    _
  %s12 = ssub.s32 1, %s10
  %s13 = scalar_select 0, %s12, %s10
  $region1: #{tpu_custom_call.1} parent=0
    #allocation2 [shape = 'u8[32768]{0}', space=vmem, size = 0x8000, scoped, tag = 'input window, operand 5, single buffered']
    #allocation3 [shape = 's32[2]{0}', space=sflag, size = 0x8, scoped, tag = 'scoped memory for tpu_custom_call.1']
    %14 = vsyncpa [#allocation3], 0
    loop: start=0, step=1, limit=4
    $region2: #{tpu_custom_call.1} parent=1 // loop_pre_header
      _
    $region3: #{tpu_custom_call.1} parent=1 // loop_header
      %s16 = sphi 0, %s20
      %p17 = scmp.ge.s32.totalorder %s16, 4
      %s26 = sphi 0, %s28
      %s29 = sphi 0, %s26
      %s30 = sphi 0, %s29
      %s46 = sphi 0, %s30
      %s50 = sphi 0, %s50
      %s52 = sphi 0, %s50
      %s53 = sphi 0, %s52
      %s67 = sphi 0, %s53
      %s71 = sphi 0, %s71
      %s73 = sphi 0, %s71
      %s74 = sphi 0, %s73
      %s88 = sphi 0, %s74
      %s92 = sphi 0, %s92
      %s94 = sphi 0, %s92
      %s95 = sphi 0, %s94
      %s109 = sphi 0, %s95
      %s113 = sphi 0, %s113
      %s115 = sphi 0, %s113
      %s116 = sphi 0, %s115
      %s130 = sphi 0, %s116
      %s134 = sphi 0, %s134
      %s136 = sphi 0, %s134
      %s137 = sphi 0, %s136
      %s151 = sphi 0, %s137
      %s155 = sphi 0, %s155
      %s157 = sphi 0, %s155
      %s158 = sphi 0, %s157
      %s172 = sphi 0, %s158
      %s176 = sphi 0, %s176
      %s178 = sphi 0, %s176
      %s179 = sphi 0, %s178
      %s193 = sphi 0, %s179
      %s197 = sphi 0, %s197
      %s199 = sphi 0, %s197
      %s200 = sphi 0, %s199
      %s214 = sphi 0, %s200
      %s220 = sphi 0, %s222
      %s223 = sphi 0, %s220
      %s224 = sphi 0, %s223
      %s240 = sphi 0, %s224
    $region4: #{tpu_custom_call.1} parent=1 // loop_header_branch
      %19 = sbr.rel (%p17) target = $region8
    $region5: #{tpu_custom_call.1} parent=1 // loop_body
      %s21 = ssub.s32 %s16, 1
      %s22 = ssub.s32 %s16, 2
      %s23 = sadd.s32 %s16, 1
      %s24 = ssub.s32 %s16, %s23
      %p25 = scmp.eq.s32.totalorder %s24, 0
      %s27 = sadd.s32 %s26, 1
      %s28 = scalar_select %p25, %s26, %s27
      %p31 = pneg %p25
      %p32 = scmp.eq.s32.totalorder %s16, 1
      %p33 = por %p31, %p32
      %p34 = scmp.ne.s32.totalorder %s26, %s29
      %p35 = scmp.eq.s32.totalorder %s16, 0
      %p36 = por %p34, %p35
      %p37 = scmp.ne.s32.totalorder %s26, %s29
      %p38 = scmp.eq.s32.totalorder %s21, 1
      %p39 = por %p37, %p38
      %p40 = scmp.ne.s32.totalorder %s29, %s30
      %p41 = scmp.eq.s32.totalorder %s21, 0
      %p42 = por %p40, %p41
      %p43 = scmp.ne.s32.totalorder %s29, %s30
      %p44 = scmp.eq.s32.totalorder %s22, 1
      %p45 = por %p43, %p44
      %p47 = scmp.ne.s32.totalorder %s30, %s46
      %p48 = scmp.eq.s32.totalorder %s22, 0
      %p49 = por %p47, %p48
      %s51 = sadd.s32 %s50, 1
      %p54 = scmp.eq.s32.totalorder %s16, 1
      %p55 = scmp.ne.s32.totalorder %s50, %s52
      %p56 = scmp.eq.s32.totalorder %s16, 0
      %p57 = por %p55, %p56
      %p58 = scmp.ne.s32.totalorder %s50, %s52
      %p59 = scmp.eq.s32.totalorder %s21, 1
      %p60 = por %p58, %p59
      %p61 = scmp.ne.s32.totalorder %s52, %s53
      %p62 = scmp.eq.s32.totalorder %s21, 0
      %p63 = por %p61, %p62
      %p64 = scmp.ne.s32.totalorder %s52, %s53
      %p65 = scmp.eq.s32.totalorder %s22, 1
      %p66 = por %p64, %p65
      %p68 = scmp.ne.s32.totalorder %s53, %s67
      %p69 = scmp.eq.s32.totalorder %s22, 0
      %p70 = por %p68, %p69
      %s72 = sadd.s32 %s71, 1
      %p75 = scmp.eq.s32.totalorder %s16, 1
      %p76 = scmp.ne.s32.totalorder %s71, %s73
      %p77 = scmp.eq.s32.totalorder %s16, 0
      %p78 = por %p76, %p77
      %p79 = scmp.ne.s32.totalorder %s71, %s73
      %p80 = scmp.eq.s32.totalorder %s21, 1
      %p81 = por %p79, %p80
      %p82 = scmp.ne.s32.totalorder %s73, %s74
      %p83 = scmp.eq.s32.totalorder %s21, 0
      %p84 = por %p82, %p83
      %p85 = scmp.ne.s32.totalorder %s73, %s74
      %p86 = scmp.eq.s32.totalorder %s22, 1
      %p87 = por %p85, %p86
      %p89 = scmp.ne.s32.totalorder %s74, %s88
      %p90 = scmp.eq.s32.totalorder %s22, 0
      %p91 = por %p89, %p90
      %s93 = sadd.s32 %s92, 1
      %p96 = scmp.eq.s32.totalorder %s16, 1
      %p97 = scmp.ne.s32.totalorder %s92, %s94
      %p98 = scmp.eq.s32.totalorder %s16, 0
      %p99 = por %p97, %p98
      %p100 = scmp.ne.s32.totalorder %s92, %s94
      %p101 = scmp.eq.s32.totalorder %s21, 1
      %p102 = por %p100, %p101
      %p103 = scmp.ne.s32.totalorder %s94, %s95
      %p104 = scmp.eq.s32.totalorder %s21, 0
      %p105 = por %p103, %p104
      %p106 = scmp.ne.s32.totalorder %s94, %s95
      %p107 = scmp.eq.s32.totalorder %s22, 1
      %p108 = por %p106, %p107
      %p110 = scmp.ne.s32.totalorder %s95, %s109
      %p111 = scmp.eq.s32.totalorder %s22, 0
      %p112 = por %p110, %p111
      %s114 = sadd.s32 %s113, 1
      %p117 = scmp.eq.s32.totalorder %s16, 1
      %p118 = scmp.ne.s32.totalorder %s113, %s115
      %p119 = scmp.eq.s32.totalorder %s16, 0
      %p120 = por %p118, %p119
      %p121 = scmp.ne.s32.totalorder %s113, %s115
      %p122 = scmp.eq.s32.totalorder %s21, 1
      %p123 = por %p121, %p122
      %p124 = scmp.ne.s32.totalorder %s115, %s116
      %p125 = scmp.eq.s32.totalorder %s21, 0
      %p126 = por %p124, %p125
      %p127 = scmp.ne.s32.totalorder %s115, %s116
      %p128 = scmp.eq.s32.totalorder %s22, 1
      %p129 = por %p127, %p128
      %p131 = scmp.ne.s32.totalorder %s116, %s130
      %p132 = scmp.eq.s32.totalorder %s22, 0
      %p133 = por %p131, %p132
      %s135 = sadd.s32 %s134, 1
      %p138 = scmp.eq.s32.totalorder %s16, 1
      %p139 = scmp.ne.s32.totalorder %s134, %s136
      %p140 = scmp.eq.s32.totalorder %s16, 0
      %p141 = por %p139, %p140
      %p142 = scmp.ne.s32.totalorder %s134, %s136
      %p143 = scmp.eq.s32.totalorder %s21, 1
      %p144 = por %p142, %p143
      %p145 = scmp.ne.s32.totalorder %s136, %s137
      %p146 = scmp.eq.s32.totalorder %s21, 0
      %p147 = por %p145, %p146
      %p148 = scmp.ne.s32.totalorder %s136, %s137
      %p149 = scmp.eq.s32.totalorder %s22, 1
      %p150 = por %p148, %p149
      %p152 = scmp.ne.s32.totalorder %s137, %s151
      %p153 = scmp.eq.s32.totalorder %s22, 0
      %p154 = por %p152, %p153
      %s156 = sadd.s32 %s155, 1
      %p159 = scmp.eq.s32.totalorder %s16, 1
      %p160 = scmp.ne.s32.totalorder %s155, %s157
      %p161 = scmp.eq.s32.totalorder %s16, 0
      %p162 = por %p160, %p161
      %p163 = scmp.ne.s32.totalorder %s155, %s157
      %p164 = scmp.eq.s32.totalorder %s21, 1
      %p165 = por %p163, %p164
      %p166 = scmp.ne.s32.totalorder %s157, %s158
      %p167 = scmp.eq.s32.totalorder %s21, 0
      %p168 = por %p166, %p167
      %p169 = scmp.ne.s32.totalorder %s157, %s158
      %p170 = scmp.eq.s32.totalorder %s22, 1
      %p171 = por %p169, %p170
      %p173 = scmp.ne.s32.totalorder %s158, %s172
      %p174 = scmp.eq.s32.totalorder %s22, 0
      %p175 = por %p173, %p174
      %s177 = sadd.s32 %s176, 1
      %p180 = scmp.eq.s32.totalorder %s16, 1
      %p181 = scmp.ne.s32.totalorder %s176, %s178
      %p182 = scmp.eq.s32.totalorder %s16, 0
      %p183 = por %p181, %p182
      %p184 = scmp.ne.s32.totalorder %s176, %s178
      %p185 = scmp.eq.s32.totalorder %s21, 1
      %p186 = por %p184, %p185
      %p187 = scmp.ne.s32.totalorder %s178, %s179
      %p188 = scmp.eq.s32.totalorder %s21, 0
      %p189 = por %p187, %p188
      %p190 = scmp.ne.s32.totalorder %s178, %s179
      %p191 = scmp.eq.s32.totalorder %s22, 1
      %p192 = por %p190, %p191
      %p194 = scmp.ne.s32.totalorder %s179, %s193
      %p195 = scmp.eq.s32.totalorder %s22, 0
      %p196 = por %p194, %p195
      %s198 = sadd.s32 %s197, 1
      %p201 = scmp.eq.s32.totalorder %s16, 1
      %p202 = scmp.ne.s32.totalorder %s197, %s199
      %p203 = scmp.eq.s32.totalorder %s16, 0
      %p204 = por %p202, %p203
      %p205 = scmp.ne.s32.totalorder %s197, %s199
      %p206 = scmp.eq.s32.totalorder %s21, 1
      %p207 = por %p205, %p206
      %p208 = scmp.ne.s32.totalorder %s199, %s200
      %p209 = scmp.eq.s32.totalorder %s21, 0
      %p210 = por %p208, %p209
      %p211 = scmp.ne.s32.totalorder %s199, %s200
      %p212 = scmp.eq.s32.totalorder %s22, 1
      %p213 = por %p211, %p212
      %p215 = scmp.ne.s32.totalorder %s200, %s214
      %p216 = scmp.eq.s32.totalorder %s22, 0
      %p217 = por %p215, %p216
      %s218 = ssub.s32 %s16, %s23
      %p219 = scmp.eq.s32.totalorder %s218, 0
      %s221 = sadd.s32 %s220, 1
      %s222 = scalar_select %p219, %s220, %s221
      %p225 = pneg %p219
      %p226 = scmp.eq.s32.totalorder %s16, 1
      %p227 = por %p225, %p226
      %p228 = scmp.ne.s32.totalorder %s220, %s223
      %p229 = scmp.eq.s32.totalorder %s16, 0
      %p230 = por %p228, %p229
      %p231 = scmp.ne.s32.totalorder %s220, %s223
      %p232 = scmp.eq.s32.totalorder %s21, 1
      %p233 = por %p231, %p232
      %p234 = scmp.ne.s32.totalorder %s223, %s224
      %p235 = scmp.eq.s32.totalorder %s21, 0
      %p236 = por %p234, %p235
      %p237 = scmp.ne.s32.totalorder %s223, %s224
      %p238 = scmp.eq.s32.totalorder %s22, 1
      %p239 = por %p237, %p238
      %p241 = scmp.ne.s32.totalorder %s224, %s240
      %p242 = scmp.eq.s32.totalorder %s22, 0
      %p243 = por %p241, %p242
      %p244 = scmp.le.s32.totalorder 1, %s16
      %p245 = scmp.lt.s32.totalorder %s16, 3
      %p246 = pnand %p244, %p245
      %p247 = pneg %p246
      // Predicated region
      $region9: #{tpu_custom_call.1} parent=5 // pred_check
        _
      $region10: #{tpu_custom_call.1} parent=5 // pred_check_branch
        %249 = sbr.rel (%p246) target = $region12
      $region11: #{tpu_custom_call.1} parent=5 // pred_region
        %s250 = ssub.s32 %s16, 1
        // Predicated region
        $region13: #{tpu_custom_call.1} parent=11 // pred_check
          %p251 = pneg %p63
        $region14: #{tpu_custom_call.1} parent=11 // pred_check_branch
          %253 = sbr.rel (%p251) target = $region16
        $region15: #{tpu_custom_call.1} parent=11 // pred_region
          _
        $region16: #{tpu_custom_call.1} parent=11 // pred_fallthru
          _
        // Predicated region
        $region17: #{tpu_custom_call.1} parent=11 // pred_check
          %p254 = pneg %p84
        $region18: #{tpu_custom_call.1} parent=11 // pred_check_branch
          %256 = sbr.rel (%p254) target = $region20
        $region19: #{tpu_custom_call.1} parent=11 // pred_region
          _
        $region20: #{tpu_custom_call.1} parent=11 // pred_fallthru
          _
        // Predicated region
        $region21: #{tpu_custom_call.1} parent=11 // pred_check
          %p257 = pneg %p105
        $region22: #{tpu_custom_call.1} parent=11 // pred_check_branch
          %259 = sbr.rel (%p257) target = $region24
        $region23: #{tpu_custom_call.1} parent=11 // pred_region
          _
        $region24: #{tpu_custom_call.1} parent=11 // pred_fallthru
          _
        // Predicated region
        $region25: #{tpu_custom_call.1} parent=11 // pred_check
          %p260 = pneg %p126
        $region26: #{tpu_custom_call.1} parent=11 // pred_check_branch
          %262 = sbr.rel (%p260) target = $region28
        $region27: #{tpu_custom_call.1} parent=11 // pred_region
          _
        $region28: #{tpu_custom_call.1} parent=11 // pred_fallthru
          _
        // Predicated region
        $region29: #{tpu_custom_call.1} parent=11 // pred_check
          %p263 = pneg %p147
        $region30: #{tpu_custom_call.1} parent=11 // pred_check_branch
          %265 = sbr.rel (%p263) target = $region32
        $region31: #{tpu_custom_call.1} parent=11 // pred_region
          %s267 = ssub.s32 1024, 1024
          %268 = vsyncadd [#allocation3], %s267
          %s269 = sshll.u32 [#allocation2], 4
          %s270 = int_to_ptr.vmem [resolvable:$true] %s269
          %275 = dma.hbm_to_vmem [thread:$0]  %s5, 1024, %s270, [#allocation3], 64, 64, 4
        $region32: #{tpu_custom_call.1} parent=11 // pred_fallthru
          _
        // Predicated region
        $region33: #{tpu_custom_call.1} parent=11 // pred_check
          %p276 = pneg %p168
        $region34: #{tpu_custom_call.1} parent=11 // pred_check_branch
          %278 = sbr.rel (%p276) target = $region36
        $region35: #{tpu_custom_call.1} parent=11 // pred_region
          _
        $region36: #{tpu_custom_call.1} parent=11 // pred_fallthru
          _
        // Predicated region
        $region37: #{tpu_custom_call.1} parent=11 // pred_check
          %p279 = pneg %p189
        $region38: #{tpu_custom_call.1} parent=11 // pred_check_branch
          %281 = sbr.rel (%p279) target = $region40
        $region39: #{tpu_custom_call.1} parent=11 // pred_region
          _
        $region40: #{tpu_custom_call.1} parent=11 // pred_fallthru
          _
        // Predicated region
        $region41: #{tpu_custom_call.1} parent=11 // pred_check
          %p282 = pneg %p210
        $region42: #{tpu_custom_call.1} parent=11 // pred_check_branch
          %284 = sbr.rel (%p282) target = $region44
        $region43: #{tpu_custom_call.1} parent=11 // pred_region
          _
        $region44: #{tpu_custom_call.1} parent=11 // pred_fallthru
          _
      $region12: #{tpu_custom_call.1} parent=5 // pred_fallthru
        _
      %p285 = scmp.lt.s32.totalorder %s16, 2
      // Predicated region
      $region45: #{tpu_custom_call.1} parent=5 // pred_check
        %p286 = pneg %p285
      $region46: #{tpu_custom_call.1} parent=5 // pred_check_branch
        %288 = sbr.rel (%p286) target = $region48
      $region47: #{tpu_custom_call.1} parent=5 // pred_region
        // Predicated region
        $region49: #{tpu_custom_call.1} parent=47 // pred_check
          %p289 = pneg %p36
        $region50: #{tpu_custom_call.1} parent=47 // pred_check_branch
          %291 = sbr.rel (%p289) target = $region52
        $region51: #{tpu_custom_call.1} parent=47 // pred_region
          %s292 = smul.u32 8, %s16
          %p293 = scmp.lt.s32.totalorder %s292, 15
          %s294 = scalar_select %p293, %s292, 15
          %s295 = smul.addr %s294, 8
          %s296 = scalar_lea.vmem %s0, %s295
          %s297 = smul.u32 8, %s16
        $region52: #{tpu_custom_call.1} parent=47 // pred_fallthru
          _
      $region48: #{tpu_custom_call.1} parent=5 // pred_fallthru
        _
      %p298 = scmp.le.s32.totalorder 1, %s16
      %p299 = scmp.lt.s32.totalorder %s16, 3
      %p300 = pnand %p298, %p299
      %p301 = pneg %p300
      // Predicated region
      $region53: #{tpu_custom_call.1} parent=5 // pred_check
        _
      $region54: #{tpu_custom_call.1} parent=5 // pred_check_branch
        %303 = sbr.rel (%p300) target = $region56
      $region55: #{tpu_custom_call.1} parent=5 // pred_region
        %s304 = ssub.s32 %s16, 1
        // Predicated region
        $region57: #{tpu_custom_call.1} parent=55 // pred_check
          %p305 = pneg %p147
        $region58: #{tpu_custom_call.1} parent=55 // pred_check_branch
          %307 = sbr.rel (%p305) target = $region60
        $region59: #{tpu_custom_call.1} parent=55 // pred_region
          %308 = dma.done [#allocation3], 1024
        $region60: #{tpu_custom_call.1} parent=55 // pred_fallthru
          _
        %s309 = smul.u32 8, %s21
        %p310 = scmp.lt.s32.totalorder %s309, 15
        %s311 = scalar_select %p310, %s309, 15
        %s312 = smul.addr %s311, 8
        %s313 = scalar_lea.vmem %s0, %s312
        %p314 = pneg %p42
        %p315 = pneg %p39
        %p316 = pneg %p63
        %p317 = pneg %p60
        %p318 = pneg %p84
        %p319 = pneg %p81
        %p320 = pneg %p105
        %p321 = pneg %p102
        %p322 = pneg %p126
        %p323 = pneg %p123
        %p324 = pneg %p147
        %p325 = pneg %p144
        %p326 = pneg %p168
        %p327 = pneg %p165
        %p328 = pneg %p189
        %p329 = pneg %p186
        %p330 = pneg %p210
        %p331 = pneg %p207
        %p332 = pneg %p236
        %p333 = pneg %p233
        %s334 = smul.u32 8, %s21
        %p335 = scmp.lt.s32.totalorder %s334, 15
        %s336 = scalar_select %p335, %s334, 15
        %s337 = smul.addr %s336, 8
        %s338 = scalar_lea.vmem %s9, %s337
        %s339 = smul.u32 8, %s21
        %p340 = scmp.lt.s32.totalorder %s339, 15
        %s341 = scalar_select %p340, %s339, 15
        %s342 = smul.addr %s341, 8
        %s343 = scalar_lea.vmem %s0, %s342
        %s344 = smul.u32 8, %s21
        %s345 = smul.u32 8, %s21
        %p346 = scmp.lt.s32.totalorder %s345, 15
        %s347 = scalar_select %p346, %s345, 15
        %s348 = smul.addr %s347, 8
        %s349 = scalar_lea.vmem %s9, %s348
        %s350 = smul.u32 8, %s21
        %v352 = vld [vmem:[%s343] sm:$0xff]
        %v353 = vld [vmem:[%s343 + $0x8] sm:$0xff]
        %v354 = vld [vmem:[%s343 + $0x10] sm:$0xff]
        %v355 = vld [vmem:[%s343 + $0x18] sm:$0xff]
        %v356 = vld [vmem:[%s343 + $0x20] sm:$0xff]
        %v357 = vld [vmem:[%s343 + $0x28] sm:$0xff]
        %v358 = vld [vmem:[%s343 + $0x30] sm:$0xff]
        %v359 = vld [vmem:[%s343 + $0x38] sm:$0xff]
        %v360 = vpack.c.bf16 %v353, %v352
        %v361 = vpack.c.bf16 %v355, %v354
        %v362 = vpack.c.bf16 %v357, %v356
        %v363 = vpack.c.bf16 %v359, %v358
        %v364 = vld [vmem:[%s2] sm:$0x1]
        %v365 = vld [vmem:[%s1] sm:$0x3]
        %v367 = vlaneseq
        %v368 = vshrl.u32 %v367, 7
        %v369 = vsub.s32 0, %v368
        %v370 = vrot.slane %v364, %v369
        %vm372 = vcmask 31744
        %v374 = vsel %vm372, %v360, 0
        %v377 = vsel %vm372, %v361, 0
        %v380 = vsel %vm372, %v362, 0
        %v383 = vsel %vm372, %v363, 0
        %vm385 = vcmask 1041408
        %v387 = vsel %vm385, %v365, 0
        %389 = vmatprep.subr.bf16.mxu0 0
        %390 = vmatpush1.bf16.msra.mxu0 %v387
        %391 = vmatprep.subr.bf16.mxu0 0
        %392 = vmatpush1.bf16.msra.mxu0 0
        %393 = vmatprep.subr.bf16.mxu0 0
        %394 = vmatpush1.bf16.msra.mxu0 0
        %395 = vmatprep.subr.bf16.mxu0 0
        %396 = vmatpush1.bf16.msra.mxu0 0
        %397 = vmatprep.subr.bf16.mxu0 0
        %398 = vmatpush1.bf16.msra.mxu0 0
        %399 = vmatprep.subr.bf16.mxu0 0
        %400 = vmatpush1.bf16.msra.mxu0 0
        %401 = vmatprep.subr.bf16.mxu0 0
        %402 = vmatpush1.bf16.msra.mxu0 0
        %403 = vmatprep.subr.bf16.mxu0 0
        %404 = vmatpush1.bf16.msra.mxu0 0
        %405 = vmatprep.subr.bf16.mxu0 0
        %406 = vmatpush1.bf16.msra.mxu0 0
        %407 = vmatprep.subr.bf16.mxu0 0
        %408 = vmatpush1.bf16.msra.mxu0 0
        %409 = vmatprep.subr.bf16.mxu0 0
        %410 = vmatpush1.bf16.msra.mxu0 0
        %411 = vmatprep.subr.bf16.mxu0 0
        %412 = vmatpush1.bf16.msra.mxu0 0
        %413 = vmatprep.subr.bf16.mxu0 0
        %414 = vmatpush1.bf16.msra.mxu0 0
        %415 = vmatprep.subr.bf16.mxu0 0
        %416 = vmatpush1.bf16.msra.mxu0 0
        %417 = vmatprep.subr.bf16.mxu0 0
        %418 = vmatpush1.bf16.msra.mxu0 0
        %419 = vmatprep.subr.bf16.mxu0 0
        %420 = vmatpush1.bf16.msra.mxu0 0
        %421 = vmatprep.mubr.bf16.mxu0 0
        %422 = vmatmul.mubr.bf16.gmra.mrb[0].mxu0 %v374
        %v423 = vpop.f32.mrb[0].mxu0
        %v424 = vadd.f32 %v370, %v423
        %v425 = vpop.f32.mrb[0].mxu0
        %v426 = vpop.f32.mrb[0].mxu0
        %v427 = vadd.f32 %v370, %v426
        %v428 = vpop.f32.mrb[0].mxu0
        %429 = vmatprep.mubr.bf16.mxu0 0
        %430 = vmatmul.mubr.bf16.gmra.mrb[0].mxu0 %v377
        %v431 = vpop.f32.mrb[0].mxu0
        %v432 = vadd.f32 %v370, %v431
        %v433 = vpop.f32.mrb[0].mxu0
        %v434 = vpop.f32.mrb[0].mxu0
        %v435 = vadd.f32 %v370, %v434
        %v436 = vpop.f32.mrb[0].mxu0
        %437 = vmatprep.mubr.bf16.mxu0 0
        %438 = vmatmul.mubr.bf16.gmra.mrb[0].mxu0 %v380
        %v439 = vpop.f32.mrb[0].mxu0
        %v440 = vadd.f32 %v370, %v439
        %v441 = vpop.f32.mrb[0].mxu0
        %v442 = vpop.f32.mrb[0].mxu0
        %v443 = vadd.f32 %v370, %v442
        %v444 = vpop.f32.mrb[0].mxu0
        %445 = vmatprep.mubr.bf16.mxu0 0
        %446 = vmatmul.mubr.bf16.gmra.mrb[0].mxu0 %v383
        %v447 = vpop.f32.mrb[0].mxu0
        %v448 = vadd.f32 %v370, %v447
        %v449 = vpop.f32.mrb[0].mxu0
        %v450 = vpop.f32.mrb[0].mxu0
        %v451 = vadd.f32 %v370, %v450
        %v452 = vpop.f32.mrb[0].mxu0
        %453 = vdwg.mxu0
        %v454 = vmax.f32 %v424, 0.0
        %v455 = vmax.f32 %v427, 0.0
        %v456 = vmax.f32 %v432, 0.0
        %v457 = vmax.f32 %v435, 0.0
        %v458 = vmax.f32 %v440, 0.0
        %v459 = vmax.f32 %v443, 0.0
        %v460 = vmax.f32 %v448, 0.0
        %v461 = vmax.f32 %v451, 0.0
        %v462 = vpack.c.bf16 %v455, %v454
        %v463 = vpack.c.bf16 %v457, %v456
        %v464 = vpack.c.bf16 %v459, %v458
        %v465 = vpack.c.bf16 %v461, %v460
        %v466 = vld [vmem:[%s4] sm:$0x1]
        %v467 = vld [vmem:[%s3] sm:$0xf]
        %v468 = vld [vmem:[%s3 + $0x4] sm:$0xf]
        %v469 = vld [vmem:[%s3 + $0x8] sm:$0xf]
        %v470 = vld [vmem:[%s3 + $0xc] sm:$0xf]
        %v471 = vld [vmem:[%s3 + $0x10] sm:$0xf]
        %v472 = vld [vmem:[%s3 + $0x14] sm:$0xf]
        %v473 = vld [vmem:[%s3 + $0x18] sm:$0xf]
        %v474 = vld [vmem:[%s3 + $0x1c] sm:$0xf]
        %v475 = vld [vmem:[%s3 + $0x20] sm:$0xf]
        %v476 = vld [vmem:[%s3 + $0x24] sm:$0xf]
        %v477 = vld [vmem:[%s3 + $0x28] sm:$0xf]
        %v478 = vld [vmem:[%s3 + $0x2c] sm:$0xf]
        %v479 = vld [vmem:[%s3 + $0x30] sm:$0xf]
        %v480 = vld [vmem:[%s3 + $0x34] sm:$0xf]
        %v481 = vld [vmem:[%s3 + $0x38] sm:$0xf]
        %v482 = vld [vmem:[%s3 + $0x3c] sm:$0xf]
        %v484 = vlaneseq
        %v485 = vshrl.u32 %v484, 7
        %v486 = vsub.s32 0, %v485
        %v487 = vrot.slane %v466, %v486
        %v505 = vunpack.c.l.b16 %v467
        %v506 = vunpack.c.l.b16 %v468
        %v507 = vunpack.c.l.b16 %v469
        %v508 = vunpack.c.l.b16 %v470
        %v509 = vunpack.c.l.b16 %v471
        %v510 = vunpack.c.l.b16 %v472
        %v511 = vunpack.c.l.b16 %v473
        %v512 = vunpack.c.l.b16 %v474
        %v513 = vunpack.c.l.b16 %v475
        %v514 = vunpack.c.l.b16 %v476
        %v515 = vunpack.c.l.b16 %v477
        %v516 = vunpack.c.l.b16 %v478
        %v517 = vunpack.c.l.b16 %v479
        %v518 = vunpack.c.l.b16 %v480
        %v519 = vunpack.c.l.b16 %v481
        %v520 = vunpack.c.l.b16 %v482
        %v521 = vpack.c.b16 %v506, %v505
        %v522 = vpack.c.b16 %v508, %v507
        %v523 = vpack.c.b16 %v510, %v509
        %v524 = vpack.c.b16 %v512, %v511
        %v525 = vpack.c.b16 %v514, %v513
        %v526 = vpack.c.b16 %v516, %v515
        %v527 = vpack.c.b16 %v518, %v517
        %v528 = vpack.c.b16 %v520, %v519
        %537 = vmatprep.subr.bf16.mxu0 0
        %538 = vmatpush1.bf16.msra.mxu0 %v521
        %539 = vmatprep.subr.bf16.mxu0 0
        %540 = vmatpush1.bf16.msra.mxu0 %v522
        %541 = vmatprep.subr.bf16.mxu0 0
        %542 = vmatpush1.bf16.msra.mxu0 %v523
        %543 = vmatprep.subr.bf16.mxu0 0
        %544 = vmatpush1.bf16.msra.mxu0 %v524
        %545 = vmatprep.subr.bf16.mxu0 0
        %546 = vmatpush1.bf16.msra.mxu0 %v525
        %547 = vmatprep.subr.bf16.mxu0 0
        %548 = vmatpush1.bf16.msra.mxu0 %v526
        %549 = vmatprep.subr.bf16.mxu0 0
        %550 = vmatpush1.bf16.msra.mxu0 %v527
        %551 = vmatprep.subr.bf16.mxu0 0
        %552 = vmatpush1.bf16.msra.mxu0 %v528
        %553 = vmatprep.subr.bf16.mxu0 0
        %554 = vmatpush1.bf16.msra.mxu0 0
        %555 = vmatprep.subr.bf16.mxu0 0
        %556 = vmatpush1.bf16.msra.mxu0 0
        %557 = vmatprep.subr.bf16.mxu0 0
        %558 = vmatpush1.bf16.msra.mxu0 0
        %559 = vmatprep.subr.bf16.mxu0 0
        %560 = vmatpush1.bf16.msra.mxu0 0
        %561 = vmatprep.subr.bf16.mxu0 0
        %562 = vmatpush1.bf16.msra.mxu0 0
        %563 = vmatprep.subr.bf16.mxu0 0
        %564 = vmatpush1.bf16.msra.mxu0 0
        %565 = vmatprep.subr.bf16.mxu0 0
        %566 = vmatpush1.bf16.msra.mxu0 0
        %567 = vmatprep.subr.bf16.mxu0 0
        %568 = vmatpush1.bf16.msra.mxu0 0
        %569 = vmatprep.mubr.bf16.mxu0 0
        %570 = vmatmul.mubr.bf16.gmra.mrb[0].mxu0 %v462
        %v571 = vpop.f32.mrb[0].mxu0
        %v572 = vadd.f32 %v487, %v571
        %v573 = vpop.f32.mrb[0].mxu0
        %v574 = vpop.f32.mrb[0].mxu0
        %v575 = vadd.f32 %v487, %v574
        %v576 = vpop.f32.mrb[0].mxu0
        %577 = vmatprep.mubr.bf16.mxu0 0
        %578 = vmatmul.mubr.bf16.gmra.mrb[0].mxu0 %v463
        %v579 = vpop.f32.mrb[0].mxu0
        %v580 = vadd.f32 %v487, %v579
        %v581 = vpop.f32.mrb[0].mxu0
        %v582 = vpop.f32.mrb[0].mxu0
        %v583 = vadd.f32 %v487, %v582
        %v584 = vpop.f32.mrb[0].mxu0
        %585 = vmatprep.mubr.bf16.mxu0 0
        %586 = vmatmul.mubr.bf16.gmra.mrb[0].mxu0 %v464
        %v587 = vpop.f32.mrb[0].mxu0
        %v588 = vadd.f32 %v487, %v587
        %v589 = vpop.f32.mrb[0].mxu0
        %v590 = vpop.f32.mrb[0].mxu0
        %v591 = vadd.f32 %v487, %v590
        %v592 = vpop.f32.mrb[0].mxu0
        %593 = vmatprep.mubr.bf16.mxu0 0
        %594 = vmatmul.mubr.bf16.gmra.mrb[0].mxu0 %v465
        %v595 = vpop.f32.mrb[0].mxu0
        %v596 = vadd.f32 %v487, %v595
        %v597 = vpop.f32.mrb[0].mxu0
        %v598 = vpop.f32.mrb[0].mxu0
        %v599 = vadd.f32 %v487, %v598
        %v600 = vpop.f32.mrb[0].mxu0
        %601 = vdwg.mxu0
        %v602 = vmax.f32 %v572, 0.0
        %v603 = vmax.f32 %v575, 0.0
        %v604 = vmax.f32 %v580, 0.0
        %v605 = vmax.f32 %v583, 0.0
        %v606 = vmax.f32 %v588, 0.0
        %v607 = vmax.f32 %v591, 0.0
        %v608 = vmax.f32 %v596, 0.0
        %v609 = vmax.f32 %v599, 0.0
        %v610 = vpack.c.bf16 %v603, %v602
        %v611 = vpack.c.bf16 %v605, %v604
        %v612 = vpack.c.bf16 %v607, %v606
        %v613 = vpack.c.bf16 %v609, %v608
        %v614 = vld [vmem:[%s6] sm:$0x1]
        %v615 = vld [vmem:[#allocation2] sm:$0xf]
        %v616 = vld [vmem:[#allocation2 + $0x4] sm:$0xf]
        %v617 = vld [vmem:[#allocation2 + $0x8] sm:$0xf]
        %v618 = vld [vmem:[#allocation2 + $0xc] sm:$0xf]
        %v619 = vld [vmem:[#allocation2 + $0x10] sm:$0xf]
        %v620 = vld [vmem:[#allocation2 + $0x14] sm:$0xf]
        %v621 = vld [vmem:[#allocation2 + $0x18] sm:$0xf]
        %v622 = vld [vmem:[#allocation2 + $0x1c] sm:$0xf]
        %v623 = vld [vmem:[#allocation2 + $0x20] sm:$0xf]
        %v624 = vld [vmem:[#allocation2 + $0x24] sm:$0xf]
        %v625 = vld [vmem:[#allocation2 + $0x28] sm:$0xf]
        %v626 = vld [vmem:[#allocation2 + $0x2c] sm:$0xf]
        %v627 = vld [vmem:[#allocation2 + $0x30] sm:$0xf]
        %v628 = vld [vmem:[#allocation2 + $0x34] sm:$0xf]
        %v629 = vld [vmem:[#allocation2 + $0x38] sm:$0xf]
        %v630 = vld [vmem:[#allocation2 + $0x3c] sm:$0xf]
        %v632 = vlaneseq
        %v633 = vshrl.u32 %v632, 7
        %v634 = vsub.s32 0, %v633
        %v635 = vrot.slane %v614, %v634
        %v653 = vunpack.c.l.b16 %v615
        %v654 = vunpack.c.l.b16 %v616
        %v655 = vunpack.c.l.b16 %v617
        %v656 = vunpack.c.l.b16 %v618
        %v657 = vunpack.c.l.b16 %v619
        %v658 = vunpack.c.l.b16 %v620
        %v659 = vunpack.c.l.b16 %v621
        %v660 = vunpack.c.l.b16 %v622
        %v661 = vunpack.c.l.b16 %v623
        %v662 = vunpack.c.l.b16 %v624
        %v663 = vunpack.c.l.b16 %v625
        %v664 = vunpack.c.l.b16 %v626
        %v665 = vunpack.c.l.b16 %v627
        %v666 = vunpack.c.l.b16 %v628
        %v667 = vunpack.c.l.b16 %v629
        %v668 = vunpack.c.l.b16 %v630
        %v669 = vpack.c.b16 %v654, %v653
        %v670 = vpack.c.b16 %v656, %v655
        %v671 = vpack.c.b16 %v658, %v657
        %v672 = vpack.c.b16 %v660, %v659
        %v673 = vpack.c.b16 %v662, %v661
        %v674 = vpack.c.b16 %v664, %v663
        %v675 = vpack.c.b16 %v666, %v665
        %v676 = vpack.c.b16 %v668, %v667
        %685 = vmatprep.subr.bf16.mxu0 0
        %686 = vmatpush1.bf16.msra.mxu0 %v669
        %687 = vmatprep.subr.bf16.mxu0 0
        %688 = vmatpush1.bf16.msra.mxu0 %v670
        %689 = vmatprep.subr.bf16.mxu0 0
        %690 = vmatpush1.bf16.msra.mxu0 %v671
        %691 = vmatprep.subr.bf16.mxu0 0
        %692 = vmatpush1.bf16.msra.mxu0 %v672
        %693 = vmatprep.subr.bf16.mxu0 0
        %694 = vmatpush1.bf16.msra.mxu0 %v673
        %695 = vmatprep.subr.bf16.mxu0 0
        %696 = vmatpush1.bf16.msra.mxu0 %v674
        %697 = vmatprep.subr.bf16.mxu0 0
        %698 = vmatpush1.bf16.msra.mxu0 %v675
        %699 = vmatprep.subr.bf16.mxu0 0
        %700 = vmatpush1.bf16.msra.mxu0 %v676
        %701 = vmatprep.subr.bf16.mxu0 0
        %702 = vmatpush1.bf16.msra.mxu0 0
        %703 = vmatprep.subr.bf16.mxu0 0
        %704 = vmatpush1.bf16.msra.mxu0 0
        %705 = vmatprep.subr.bf16.mxu0 0
        %706 = vmatpush1.bf16.msra.mxu0 0
        %707 = vmatprep.subr.bf16.mxu0 0
        %708 = vmatpush1.bf16.msra.mxu0 0
        %709 = vmatprep.subr.bf16.mxu0 0
        %710 = vmatpush1.bf16.msra.mxu0 0
        %711 = vmatprep.subr.bf16.mxu0 0
        %712 = vmatpush1.bf16.msra.mxu0 0
        %713 = vmatprep.subr.bf16.mxu0 0
        %714 = vmatpush1.bf16.msra.mxu0 0
        %715 = vmatprep.subr.bf16.mxu0 0
        %716 = vmatpush1.bf16.msra.mxu0 0
        %717 = vmatprep.mubr.bf16.mxu0 0
        %718 = vmatmul.mubr.bf16.gmra.mrb[0].mxu0 %v610
        %v719 = vpop.f32.mrb[0].mxu0
        %v720 = vadd.f32 %v635, %v719
        %v721 = vpop.f32.mrb[0].mxu0
        %v722 = vpop.f32.mrb[0].mxu0
        %v723 = vadd.f32 %v635, %v722
        %v724 = vpop.f32.mrb[0].mxu0
        %725 = vmatprep.mubr.bf16.mxu0 0
        %726 = vmatmul.mubr.bf16.gmra.mrb[0].mxu0 %v611
        %v727 = vpop.f32.mrb[0].mxu0
        %v728 = vadd.f32 %v635, %v727
        %v729 = vpop.f32.mrb[0].mxu0
        %v730 = vpop.f32.mrb[0].mxu0
        %v731 = vadd.f32 %v635, %v730
        %v732 = vpop.f32.mrb[0].mxu0
        %733 = vmatprep.mubr.bf16.mxu0 0
        %734 = vmatmul.mubr.bf16.gmra.mrb[0].mxu0 %v612
        %v735 = vpop.f32.mrb[0].mxu0
        %v736 = vadd.f32 %v635, %v735
        %v737 = vpop.f32.mrb[0].mxu0
        %v738 = vpop.f32.mrb[0].mxu0
        %v739 = vadd.f32 %v635, %v738
        %v740 = vpop.f32.mrb[0].mxu0
        %741 = vmatprep.mubr.bf16.mxu0 0
        %742 = vmatmul.mubr.bf16.gmra.mrb[0].mxu0 %v613
        %v743 = vpop.f32.mrb[0].mxu0
        %v744 = vadd.f32 %v635, %v743
        %v745 = vpop.f32.mrb[0].mxu0
        %v746 = vpop.f32.mrb[0].mxu0
        %v747 = vadd.f32 %v635, %v746
        %v748 = vpop.f32.mrb[0].mxu0
        %749 = vdwg.mxu0
        %v750 = vmax.f32 %v720, 0.0
        %v751 = vmax.f32 %v723, 0.0
        %v752 = vmax.f32 %v728, 0.0
        %v753 = vmax.f32 %v731, 0.0
        %v754 = vmax.f32 %v736, 0.0
        %v755 = vmax.f32 %v739, 0.0
        %v756 = vmax.f32 %v744, 0.0
        %v757 = vmax.f32 %v747, 0.0
        %v758 = vpack.c.bf16 %v751, %v750
        %v759 = vpack.c.bf16 %v753, %v752
        %v760 = vpack.c.bf16 %v755, %v754
        %v761 = vpack.c.bf16 %v757, %v756
        %v762 = vld [vmem:[%s8] sm:$0x1]
        %v763 = vld [vmem:[%s7] sm:$0xf]
        %v764 = vld [vmem:[%s7 + $0x4] sm:$0xf]
        %v765 = vld [vmem:[%s7 + $0x8] sm:$0xf]
        %v766 = vld [vmem:[%s7 + $0xc] sm:$0xf]
        %v767 = vld [vmem:[%s7 + $0x10] sm:$0xf]
        %v768 = vld [vmem:[%s7 + $0x14] sm:$0xf]
        %v769 = vld [vmem:[%s7 + $0x18] sm:$0xf]
        %v770 = vld [vmem:[%s7 + $0x1c] sm:$0xf]
        %v771 = vld [vmem:[%s7 + $0x20] sm:$0xf]
        %v772 = vld [vmem:[%s7 + $0x24] sm:$0xf]
        %v773 = vld [vmem:[%s7 + $0x28] sm:$0xf]
        %v774 = vld [vmem:[%s7 + $0x2c] sm:$0xf]
        %v775 = vld [vmem:[%s7 + $0x30] sm:$0xf]
        %v776 = vld [vmem:[%s7 + $0x34] sm:$0xf]
        %v777 = vld [vmem:[%s7 + $0x38] sm:$0xf]
        %v778 = vld [vmem:[%s7 + $0x3c] sm:$0xf]
        %v779 = vld [vmem:[%s7 + $0x40] sm:$0x3]
        %v781 = vsel %vm385, %v779, 0
        %783 = vmatprep.subr.bf16.mxu0 0
        %784 = vmatpush1.bf16.msra.mxu0 %v781
        %785 = vmatprep.subr.bf16.mxu0 0
        %786 = vmatpush1.bf16.msra.mxu0 0
        %787 = vmatprep.subr.bf16.mxu0 0
        %788 = vmatpush1.bf16.msra.mxu0 0
        %789 = vmatprep.subr.bf16.mxu0 0
        %790 = vmatpush1.bf16.msra.mxu0 0
        %791 = vmatprep.subr.bf16.mxu0 0
        %792 = vmatpush1.bf16.msra.mxu0 0
        %793 = vmatprep.subr.bf16.mxu0 0
        %794 = vmatpush1.bf16.msra.mxu0 0
        %795 = vmatprep.subr.bf16.mxu0 0
        %796 = vmatpush1.bf16.msra.mxu0 0
        %797 = vmatprep.subr.bf16.mxu0 0
        %798 = vmatpush1.bf16.msra.mxu0 0
        %799 = vmatprep.subr.bf16.mxu0 0
        %800 = vmatpush1.bf16.msra.mxu0 0
        %801 = vmatprep.subr.bf16.mxu0 0
        %802 = vmatpush1.bf16.msra.mxu0 0
        %803 = vmatprep.subr.bf16.mxu0 0
        %804 = vmatpush1.bf16.msra.mxu0 0
        %805 = vmatprep.subr.bf16.mxu0 0
        %806 = vmatpush1.bf16.msra.mxu0 0
        %807 = vmatprep.subr.bf16.mxu0 0
        %808 = vmatpush1.bf16.msra.mxu0 0
        %809 = vmatprep.subr.bf16.mxu0 0
        %810 = vmatpush1.bf16.msra.mxu0 0
        %811 = vmatprep.subr.bf16.mxu0 0
        %812 = vmatpush1.bf16.msra.mxu0 0
        %813 = vmatprep.subr.bf16.mxu0 0
        %814 = vmatpush1.bf16.msra.mxu0 0
        %815 = vmatprep.mubr.bf16.mxu0 0
        %816 = vmatmul.mubr.bf16.gmra.mrb[0].mxu0 %v374
        %v817 = vpop.f32.mrb[0].mxu0
        %v818 = vadd.f32 0.0, %v817
        %v819 = vpop.f32.mrb[0].mxu0
        %v820 = vpop.f32.mrb[0].mxu0
        %v821 = vadd.f32 0.0, %v820
        %v822 = vpop.f32.mrb[0].mxu0
        %823 = vmatprep.mubr.bf16.mxu0 0
        %824 = vmatmul.mubr.bf16.gmra.mrb[0].mxu0 %v377
        %v825 = vpop.f32.mrb[0].mxu0
        %v826 = vadd.f32 0.0, %v825
        %v827 = vpop.f32.mrb[0].mxu0
        %v828 = vpop.f32.mrb[0].mxu0
        %v829 = vadd.f32 0.0, %v828
        %v830 = vpop.f32.mrb[0].mxu0
        %831 = vmatprep.mubr.bf16.mxu0 0
        %832 = vmatmul.mubr.bf16.gmra.mrb[0].mxu0 %v380
        %v833 = vpop.f32.mrb[0].mxu0
        %v834 = vadd.f32 0.0, %v833
        %v835 = vpop.f32.mrb[0].mxu0
        %v836 = vpop.f32.mrb[0].mxu0
        %v837 = vadd.f32 0.0, %v836
        %v838 = vpop.f32.mrb[0].mxu0
        %839 = vmatprep.mubr.bf16.mxu0 0
        %840 = vmatmul.mubr.bf16.gmra.mrb[0].mxu0 %v383
        %v841 = vpop.f32.mrb[0].mxu0
        %v842 = vadd.f32 0.0, %v841
        %v843 = vpop.f32.mrb[0].mxu0
        %v844 = vpop.f32.mrb[0].mxu0
        %v845 = vadd.f32 0.0, %v844
        %v846 = vpop.f32.mrb[0].mxu0
        %847 = vdwg.mxu0
        %v864 = vunpack.c.l.b16 %v763
        %v865 = vunpack.c.l.b16 %v764
        %v866 = vunpack.c.l.b16 %v765
        %v867 = vunpack.c.l.b16 %v766
        %v868 = vunpack.c.l.b16 %v767
        %v869 = vunpack.c.l.b16 %v768
        %v870 = vunpack.c.l.b16 %v769
        %v871 = vunpack.c.l.b16 %v770
        %v872 = vunpack.c.l.b16 %v771
        %v873 = vunpack.c.l.b16 %v772
        %v874 = vunpack.c.l.b16 %v773
        %v875 = vunpack.c.l.b16 %v774
        %v876 = vunpack.c.l.b16 %v775
        %v877 = vunpack.c.l.b16 %v776
        %v878 = vunpack.c.l.b16 %v777
        %v879 = vunpack.c.l.b16 %v778
        %v880 = vpack.c.b16 %v865, %v864
        %v881 = vpack.c.b16 %v867, %v866
        %v882 = vpack.c.b16 %v869, %v868
        %v883 = vpack.c.b16 %v871, %v870
        %v884 = vpack.c.b16 %v873, %v872
        %v885 = vpack.c.b16 %v875, %v874
        %v886 = vpack.c.b16 %v877, %v876
        %v887 = vpack.c.b16 %v879, %v878
        %896 = vmatprep.subr.bf16.mxu0 0
        %897 = vmatpush1.bf16.msra.mxu0 %v880
        %898 = vmatprep.subr.bf16.mxu0 0
        %899 = vmatpush1.bf16.msra.mxu0 %v881
        %900 = vmatprep.subr.bf16.mxu0 0
        %901 = vmatpush1.bf16.msra.mxu0 %v882
        %902 = vmatprep.subr.bf16.mxu0 0
        %903 = vmatpush1.bf16.msra.mxu0 %v883
        %904 = vmatprep.subr.bf16.mxu0 0
        %905 = vmatpush1.bf16.msra.mxu0 %v884
        %906 = vmatprep.subr.bf16.mxu0 0
        %907 = vmatpush1.bf16.msra.mxu0 %v885
        %908 = vmatprep.subr.bf16.mxu0 0
        %909 = vmatpush1.bf16.msra.mxu0 %v886
        %910 = vmatprep.subr.bf16.mxu0 0
        %911 = vmatpush1.bf16.msra.mxu0 %v887
        %912 = vmatprep.subr.bf16.mxu0 0
        %913 = vmatpush1.bf16.msra.mxu0 0
        %914 = vmatprep.subr.bf16.mxu0 0
        %915 = vmatpush1.bf16.msra.mxu0 0
        %916 = vmatprep.subr.bf16.mxu0 0
        %917 = vmatpush1.bf16.msra.mxu0 0
        %918 = vmatprep.subr.bf16.mxu0 0
        %919 = vmatpush1.bf16.msra.mxu0 0
        %920 = vmatprep.subr.bf16.mxu0 0
        %921 = vmatpush1.bf16.msra.mxu0 0
        %922 = vmatprep.subr.bf16.mxu0 0
        %923 = vmatpush1.bf16.msra.mxu0 0
        %924 = vmatprep.subr.bf16.mxu0 0
        %925 = vmatpush1.bf16.msra.mxu0 0
        %926 = vmatprep.subr.bf16.mxu0 0
        %927 = vmatpush1.bf16.msra.mxu0 0
        %928 = vmatprep.mubr.bf16.mxu0 0
        %929 = vmatmul.mubr.bf16.gmra.mrb[0].mxu0 %v758
        %v930 = vpop.f32.mrb[0].mxu0
        %v931 = vadd.f32 %v818, %v930
        %v932 = vpop.f32.mrb[0].mxu0
        %v933 = vpop.f32.mrb[0].mxu0
        %v934 = vadd.f32 %v821, %v933
        %v935 = vpop.f32.mrb[0].mxu0
        %936 = vmatprep.mubr.bf16.mxu0 0
        %937 = vmatmul.mubr.bf16.gmra.mrb[0].mxu0 %v759
        %v938 = vpop.f32.mrb[0].mxu0
        %v939 = vadd.f32 %v826, %v938
        %v940 = vpop.f32.mrb[0].mxu0
        %v941 = vpop.f32.mrb[0].mxu0
        %v942 = vadd.f32 %v829, %v941
        %v943 = vpop.f32.mrb[0].mxu0
        %944 = vmatprep.mubr.bf16.mxu0 0
        %945 = vmatmul.mubr.bf16.gmra.mrb[0].mxu0 %v760
        %v946 = vpop.f32.mrb[0].mxu0
        %v947 = vadd.f32 %v834, %v946
        %v948 = vpop.f32.mrb[0].mxu0
        %v949 = vpop.f32.mrb[0].mxu0
        %v950 = vadd.f32 %v837, %v949
        %v951 = vpop.f32.mrb[0].mxu0
        %952 = vmatprep.mubr.bf16.mxu0 0
        %953 = vmatmul.mubr.bf16.gmra.mrb[0].mxu0 %v761
        %v954 = vpop.f32.mrb[0].mxu0
        %v955 = vadd.f32 %v842, %v954
        %v956 = vpop.f32.mrb[0].mxu0
        %v957 = vpop.f32.mrb[0].mxu0
        %v958 = vadd.f32 %v845, %v957
        %v959 = vpop.f32.mrb[0].mxu0
        %960 = vdwg.mxu0
        %v962 = vlaneseq
        %v963 = vshrl.u32 %v962, 7
        %v964 = vsub.s32 0, %v963
        %v965 = vrot.slane %v762, %v964
        %v967 = vadd.f32 %v931, %v965
        %v968 = vadd.f32 %v934, %v965
        %v969 = vadd.f32 %v939, %v965
        %v970 = vadd.f32 %v942, %v965
        %v971 = vadd.f32 %v947, %v965
        %v972 = vadd.f32 %v950, %v965
        %v973 = vadd.f32 %v955, %v965
        %v974 = vadd.f32 %v958, %v965
        %v975 = vmax.f32 %v967, 0.0
        %v976 = vmax.f32 %v968, 0.0
        %v977 = vmax.f32 %v969, 0.0
        %v978 = vmax.f32 %v970, 0.0
        %v979 = vmax.f32 %v971, 0.0
        %v980 = vmax.f32 %v972, 0.0
        %v981 = vmax.f32 %v973, 0.0
        %v982 = vmax.f32 %v974, 0.0
        %983 = vst.msk [vmem:[%s349] sm:$0xff] %vm372, %v975
        %984 = vst.msk [vmem:[%s349 + $0x8] sm:$0xff] %vm372, %v976
        %985 = vst.msk [vmem:[%s349 + $0x10] sm:$0xff] %vm372, %v977
        %986 = vst.msk [vmem:[%s349 + $0x18] sm:$0xff] %vm372, %v978
        %987 = vst.msk [vmem:[%s349 + $0x20] sm:$0xff] %vm372, %v979
        %988 = vst.msk [vmem:[%s349 + $0x28] sm:$0xff] %vm372, %v980
        %989 = vst.msk [vmem:[%s349 + $0x30] sm:$0xff] %vm372, %v981
        %990 = vst.msk [vmem:[%s349 + $0x38] sm:$0xff] %vm372, %v982
        %s991 = smul.u32 8, %s21
        %p992 = scmp.lt.s32.totalorder %s991, 15
        %s993 = scalar_select %p992, %s991, 15
        %s994 = smul.addr %s993, 8
        %s995 = scalar_lea.vmem %s9, %s994
        // Predicated region
        $region61: #{tpu_custom_call.1} parent=55 // pred_check
          %p996 = pneg %p233
        $region62: #{tpu_custom_call.1} parent=55 // pred_check_branch
          %998 = sbr.rel (%p996) target = $region64
        $region63: #{tpu_custom_call.1} parent=55 // pred_region
          %s999 = smul.u32 8, %s21
        $region64: #{tpu_custom_call.1} parent=55 // pred_fallthru
          _
      $region56: #{tpu_custom_call.1} parent=5 // pred_fallthru
        _
      %p1000 = scmp.le.s32.totalorder 2, %s16
      // Predicated region
      $region65: #{tpu_custom_call.1} parent=5 // pred_check
        %p1001 = pneg %p1000
      $region66: #{tpu_custom_call.1} parent=5 // pred_check_branch
        %1003 = sbr.rel (%p1001) target = $region68
      $region67: #{tpu_custom_call.1} parent=5 // pred_region
        %s1004 = ssub.s32 %s16, 2
        // Predicated region
        $region69: #{tpu_custom_call.1} parent=67 // pred_check
          %p1005 = pneg %p239
        $region70: #{tpu_custom_call.1} parent=67 // pred_check_branch
          %1007 = sbr.rel (%p1005) target = $region72
        $region71: #{tpu_custom_call.1} parent=67 // pred_region
          %s1008 = smul.u32 8, %s22
          %p1009 = scmp.lt.s32.totalorder %s1008, 15
          %s1010 = scalar_select %p1009, %s1008, 15
          %s1011 = smul.addr %s1010, 8
          %s1012 = scalar_lea.vmem %s9, %s1011
        $region72: #{tpu_custom_call.1} parent=67 // pred_fallthru
          _
      $region68: #{tpu_custom_call.1} parent=5 // pred_fallthru
        _
    $region6: #{tpu_custom_call.1} parent=1 // loop_footer
      %s20 = sadd.s32 1, %s16
    $region7: #{tpu_custom_call.1} parent=1 // loop_footer_branch
      %15 = sbr.rel target = $region3
    $region8: #{tpu_custom_call.1} parent=1 // loop_exit
      _
    %1013 = vsyncpa [#allocation3], 1
    %s1014 = scalar_lea.sflag [#allocation3], 1
    %1015 = vsyncpa %s1014, 1

</llo_original>
